<compile_context>
chip_gen: v5e
topology: v5e:2x2
jax: 0.10.0
libtpu: 0.0.40
codegen_flags: <defaults>
</compile_context>

<pallas_src>
import functools

import numpy as np
import jax
import jax.numpy as jnp
from jax import lax
from jax.experimental import pallas as pl
from jax.experimental.pallas import tpu as pltpu


def _round_up(v, m):
    return -(-v // m) * m


def _head_terms(m2):
    """Static (q_src, q_off, k_src, k_off, width) score terms per attention head.

    After channel_shuffle(groups=2), each head's paired q[:, c]/k[:, c] columns map
    to contiguous column slices of the two natural projections pa (from x1) and pb
    (from x2); q@k^T is invariant to a consistent column reordering, so each head's
    scores decompose into at most two slice-vs-slice contractions (any m2 parity).
    """
    heads = []
    for h in range(2):
        t = [((0 if m2 % 2 == 0 else 1), m2 * h + m2 // 2, 0, m2 * h, (m2 + 1) // 2)]
        if m2 // 2:
            t.append(((1 if m2 % 2 == 0 else 0), m2 * h + (m2 + 1) // 2, 1, m2 * h, m2 // 2))
        heads.append(tuple(t))
    return tuple(heads)


def _cross_atten_kernel(
    xr_ref,                 # (1, tq, inc1_p) f32 : residual tile
    xv_ref,                 # (1, N, inc1)   bf16 : V source (raw x)
    x1_ref, x2_ref,         # (1, N, inc1/inc2) bf16 : K/Q sources
    wa_ref, ba_ref, wb_ref, bb_ref,   # fused K/Q proj weights (bf16) + biases (f32)
    wv_ref, bv_ref,                   # fused V proj (inc1, 2*m1) bf16 + bias
    wo_ref, bo_ref,                   # fused out proj (2*m1, inc1_p) bf16 + bias
    out_ref,                          # (1, tq, inc1_p) f32
    kq_s, v1_s, v2_s,                 # persistent VMEM scratch
    *, tq, m1, m2, terms,
):
    f32 = jnp.float32
    bf16 = jnp.bfloat16

    # ---- Hoisted once per batch (q-tile 0): full-N projections -> scratch ----
    @pl.when(pl.program_id(1) == 0)
    def _project():
        # BN1/BN2 affine, channel_shuffle and the 1/sqrt(m2) score scale are
        # already folded into wa/ba/wb/bb on the host.
        pa = jnp.dot(x1_ref[0], wa_ref[...], preferred_element_type=f32) + ba_ref[...]
        pb = jnp.dot(x2_ref[0], wb_ref[...], preferred_element_type=f32) + bb_ref[...]
        # Pack per-head keys/queries with matched column pairing so each head's
        # score matrix is a single K=m2 contraction.  Layout: [k1 | q1 | k2 | q2].
        pieces = []
        for ht in terms:
            pieces += [(pa if ks == 0 else pb)[:, ko:ko + w] for (_, _, ks, ko, w) in ht]
            pieces += [(pa if qs == 0 else pb)[:, qo:qo + w] for (qs, qo, _, _, w) in ht]
        kq_s[...] = jnp.concatenate(pieces, axis=1).astype(bf16)
        # Fused V projection from raw x; split per head once (not per q-tile).
        v = jnp.dot(xv_ref[0], wv_ref[...], preferred_element_type=f32) + bv_ref[...]
        v1_s[...] = v[:, :m1].astype(bf16)
        v2_s[...] = v[:, m1:].astype(bf16)

    # ---- Per query tile ----
    q_start = pl.multiple_of(pl.program_id(1) * tq, tq)

    def attend(h, v_ref):
        k_off = 2 * m2 * h
        q_t = kq_s[pl.ds(q_start, tq), pl.ds(k_off + m2, m2)]       # (tq, m2) bf16
        k_t = kq_s[:, pl.ds(k_off, m2)]                             # (N,  m2) bf16
        s = lax.dot_general(q_t, k_t, (((1,), (1,)), ((), ())),
                            preferred_element_type=f32)             # (tq, N) f32
        e = jnp.exp(s - jnp.max(s, axis=-1, keepdims=True))
        # Deferred softmax normalization: unnormalized exp @ V, then rescale the
        # small (tq, m1) result.  dropout(0.2) is the identity in eval mode.
        pv = jnp.dot(e.astype(bf16), v_ref[...], preferred_element_type=f32)
        return pv * pl.reciprocal(jnp.sum(e, axis=-1, keepdims=True), approx=True)

    o = jnp.concatenate([attend(0, v1_s), attend(1, v2_s)], axis=1)  # (tq, 2*m1)
    # Single fused out_conv (bn_last folded in) + f32 residual; lane-dense store.
    out = jnp.dot(o.astype(bf16), wo_ref[...], preferred_element_type=f32) + bo_ref[...]
    out_ref[0] = out + xr_ref[0]


def _vmem_estimate(tq, *, N, inc1, inc2, inc1_p, m1, m2):
    """Rough per-step VMEM working set in bytes (double-buffered blocks included)."""
    padl = lambda c: _round_up(c, 128)
    bf, f = 2, 4
    inputs = 2 * (tq * inc1_p * f                     # residual tile
                  + N * padl(inc1) * bf * 2           # xv + x1
                  + N * padl(inc2) * bf)              # x2
    outputs = 2 * tq * inc1_p * f
    scratch = N * (padl(4 * m2) + 2 * padl(m1)) * bf
    weights = 2 * ((inc1 + inc2) * padl(2 * m2) + inc1 * padl(2 * m1)
                   + _round_up(2 * m1, 8) * inc1_p) * bf
    hoist_tmp = N * (2 * padl(2 * m2) + padl(2 * m1)) * f      # pa, pb, v in f32
    score_tmp = tq * padl(N) * (f + f + bf)                    # s, exp (f32) + exp (bf16)
    return inputs + outputs + scratch + weights + max(hoist_tmp, score_tmp) + (2 << 20)


def _pick_tq(N, est_fn, budget, max_tq=None):
    cands = [N] + [c for c in (2048, 1024, 512, 256, 128) if c < N and N % c == 0]
    if max_tq is not None:
        filt = [c for c in cands if c <= max_tq]
        cands = filt or [min(cands)]
    for c in cands:
        if est_fn(c) <= budget:
            return c
    # TODO(synk): flash-style key tiling for N so large even the smallest tq misses.
    return cands[-1]


def cross_atten_lite_split(x, x1, x2, params, *, max_tq=None):
    B, inc1, H, W = x.shape
    inc2 = x2.shape[1]
    N = H * W
    m1, m2 = inc1 // 4, inc2 // 4
    inc1_p = _round_up(inc1, 128)     # lane-dense output/residual width
    eps = 1e-5
    f32, bf16 = jnp.float32, jnp.bfloat16

    def to_tokens(z, dt):  # NCHW -> (B, H*W, C)
        return jnp.transpose(z, (0, 2, 3, 1)).reshape(B, N, -1).astype(dt)

    xr = to_tokens(x, f32)                     # exact f32 residual
    if inc1_p != inc1:
        xr = jnp.pad(xr, ((0, 0), (0, 0), (0, inc1_p - inc1)))
    xv = to_tokens(x, bf16)                    # V-path operand
    x1t = to_tokens(x1, bf16)
    x2t = to_tokens(x2, bf16)

    def bn_fold(gamma, beta, mean, var):
        s = gamma / jnp.sqrt(var + eps)
        return s, beta - mean * s

    bn1_s, bn1_b = bn_fold(*params["bn1"])
    bn2_s, bn2_b = bn_fold(*params["bn2"])
    bnl_s, bnl_b = bn_fold(*params["bnl"])

    inv_sqrt = 1.0 / np.sqrt(np.float32(m2))

    # Columns of each natural K/Q projection that land in a "q" role after the
    # shuffle: fold the 1/sqrt(m2) score scale into those columns (and bias).
    def q_col_scale(src):
        c = np.arange(2 * m2)
        is_q = ((2 * c + src) % (2 * m2)) >= m2
        return jnp.asarray(np.where(is_q, inv_sqrt, 1.0), f32)

    sa, sb = q_col_scale(0), q_col_scale(1)

    # K/Q projections with BN1/BN2 affine and q-scale folded in.
    W1, b1 = params["Wkq1"], params["bkq1"]       # (2*m2, inc1), (2*m2,)
    W2, b2 = params["Wkq2"], params["bkq2"]       # (2*m2, inc2), (2*m2,)
    wa = (W1.T * bn1_s[:, None] * sa[None, :]).astype(bf16)          # (inc1, 2*m2)
    ba = ((bn1_b @ W1.T + b1) * sa).reshape(1, -1).astype(f32)
    wb = (W2.T * bn2_s[:, None] * sb[None, :]).astype(bf16)          # (inc2, 2*m2)
    bb = ((bn2_b @ W2.T + b2) * sb).reshape(1, -1).astype(f32)

    # Fused V projection.
    Wv, bvp = params["Wv"], params["bv"]          # (2*m1, inc1), (2*m1,)
    wv = Wv.T.astype(bf16)                        # (inc1, 2*m1)
    bv = bvp.reshape(1, -1).astype(f32)

    # Fused out_conv with bn_last folded in; padded to a lane-dense width.
    Wout, bout = params["Wout"], params["bout"]   # (inc1, 2*m1), (inc1,)
    wo = Wout.T * bnl_s[None, :]                  # (2*m1, inc1) f32
    bo = bout * bnl_s + bnl_b
    if inc1_p != inc1:
        wo = jnp.pad(wo, ((0, 0), (0, inc1_p - inc1)))
        bo = jnp.pad(bo, ((0, inc1_p - inc1),))
    wo = wo.astype(bf16)
    bo = bo.reshape(1, -1).astype(f32)

    # Tile size / VMEM budget from the actual device capacity.
    try:
        vmem_cap = int(pltpu.get_tpu_info().vmem_capacity_bytes)
    except Exception:
        vmem_cap = 64 * 2**20      # conservative (v7x per-core VMEM)
    budget = int(0.75 * vmem_cap)
    est_fn = functools.partial(_vmem_estimate, N=N, inc1=inc1, inc2=inc2,
                               inc1_p=inc1_p, m1=m1, m2=m2)
    tq = _pick_tq(N, est_fn, budget, max_tq)
    nq = N // tq
    vmem_limit = int(min(vmem_cap, max(int(1.25 * est_fn(tq)), 32 * 2**20)))

    terms = _head_terms(m2)
    kernel = functools.partial(_cross_atten_kernel, tq=tq, m1=m1, m2=m2, terms=terms)

    def batch_spec(c):
        return pl.BlockSpec((1, N, c), lambda b, q: (b, 0, 0))

    def tile_spec():
        return pl.BlockSpec((1, tq, inc1_p), lambda b, q: (b, q, 0))

    def full_spec(arr):
        return pl.BlockSpec(arr.shape, lambda b, q: (0, 0))

    out_tokens = pl.pallas_call(
        kernel,
        out_shape=jax.ShapeDtypeStruct((B, N, inc1_p), jnp.float32),
        grid=(B, nq),
        in_specs=[
            tile_spec(),                 # xr (f32 residual tile)
            batch_spec(inc1),            # xv (bf16, V source)
            batch_spec(inc1),            # x1 (bf16, K/Q source 1)
            batch_spec(inc2),            # x2 (bf16, K/Q source 2)
            full_spec(wa), full_spec(ba), full_spec(wb), full_spec(bb),
            full_spec(wv), full_spec(bv), full_spec(wo), full_spec(bo),
        ],
        out_specs=tile_spec(),
        scratch_shapes=[
            pltpu.VMEM((N, 4 * m2), jnp.bfloat16),   # packed [k1|q1|k2|q2]
            pltpu.VMEM((N, m1), jnp.bfloat16),       # v1
            pltpu.VMEM((N, m1), jnp.bfloat16),       # v2
        ],
        compiler_params=pltpu.CompilerParams(
            dimension_semantics=("parallel", "arbitrary"),
            vmem_limit_bytes=vmem_limit),
    )(xr, xv, x1t, x2t, wa, ba, wb, bb, wv, bv, wo, bo)

    out_tokens = out_tokens[..., :inc1]
    return jnp.transpose(out_tokens.reshape(B, H, W, inc1), (0, 3, 1, 2))


def init_params(key, inc1, inc2):
    """Deterministic synthetic parameters matching the module's __init__ shapes."""
    m1, m2 = inc1 // 4, inc2 // 4
    ks = jax.random.split(key, 20)

    def lin(kw, kb, out_f, in_f):
        lim = 1.0 / np.sqrt(in_f)
        Wm = jax.random.uniform(kw, (out_f, in_f), jnp.float32, -lim, lim)
        bm = jax.random.uniform(kb, (out_f,), jnp.float32, -lim, lim)
        return Wm, bm

    def bn(kg, kb, km, kv, c):
        gamma = jax.random.uniform(kg, (c,), jnp.float32, 0.5, 1.5)
        beta = jax.random.uniform(kb, (c,), jnp.float32, -0.5, 0.5)
        mean = jax.random.uniform(km, (c,), jnp.float32, -0.5, 0.5)
        var = jax.random.uniform(kv, (c,), jnp.float32, 0.5, 1.5)
        return (gamma, beta, mean, var)

    Wkq1, bkq1 = lin(ks[0], ks[1], 2 * m2, inc1)
    Wkq2, bkq2 = lin(ks[2], ks[3], 2 * m2, inc2)
    Wv, bv = lin(ks[4], ks[5], 2 * m1, inc1)
    Wout, bout = lin(ks[6], ks[7], inc1, 2 * m1)
    return {
        "Wkq1": Wkq1, "bkq1": bkq1,
        "Wkq2": Wkq2, "bkq2": bkq2,
        "Wv": Wv, "bv": bv,
        "Wout": Wout, "bout": bout,
        "bn1": bn(ks[8], ks[9], ks[10], ks[11], inc1),
        "bn2": bn(ks[12], ks[13], ks[14], ks[15], inc2),
        "bnl": bn(ks[16], ks[17], ks[18], ks[19], inc1),
    }


def reference(x, x1, x2, params):
    """Pure-JAX f32 line-by-line port of the PyTorch forward (eval mode)."""
    B, inc1, H, W = x.shape
    inc2 = x2.shape[1]
    N = H * W
    m1, m2 = inc1 // 4, inc2 // 4
    eps = 1e-5

    def bn(z, p):
        g, b, m, v = p
        return ((z - m[None, :, None, None]) / jnp.sqrt(v[None, :, None, None] + eps)
                * g[None, :, None, None] + b[None, :, None, None])

    def flat(z):
        return jnp.transpose(z, (0, 2, 3, 1)).reshape(B, N, -1)

    x1n = bn(x1, params["bn1"])
    x2n = bn(x2, params["bn2"])
    kq1 = flat(x1n) @ params["Wkq1"].T + params["bkq1"]
    kq2 = flat(x2n) @ params["Wkq2"].T + params["bkq2"]
    kq = jnp.concatenate([kq1, kq2], axis=2)
    # channel_shuffle(groups=2)
    kq = kq.reshape(B, N, 2, 2 * m2).transpose(0, 1, 3, 2).reshape(B, N, 4 * m2)
    k1, q1, k2, q2 = (kq[..., :m2], kq[..., m2:2 * m2],
                      kq[..., 2 * m2:3 * m2], kq[..., 3 * m2:])
    v = flat(x) @ params["Wv"].T + params["bv"]
    v1, v2 = v[..., :m1], v[..., m1:]
    scale = 1.0 / jnp.sqrt(jnp.float32(m2))

    def attn(q, k, vv):
        s = jnp.einsum("bnd,bmd->bnm", q, k) * scale
        p = jax.nn.softmax(s, axis=-1)
        return jnp.einsum("bnm,bmd->bnd", p, vv)

    o = jnp.concatenate([attn(q1, k1, v1), attn(q2, k2, v2)], axis=-1)
    o = o @ params["Wout"].T + params["bout"]
    o = jnp.transpose(o.reshape(B, H, W, inc1), (0, 3, 1, 2))
    o = bn(o, params["bnl"])
    return o + x


if __name__ == "__main__":
    key = jax.random.PRNGKey(0)

    def run_case(case_key, B, inc1, inc2, H, W, max_tq=None):
        kx, kx1, kx2, kp = jax.random.split(case_key, 4)
        x = jax.random.normal(kx, (B, inc1, H, W), jnp.float32)
        x1 = jax.random.normal(kx1, (B, inc1, H, W), jnp.float32)
        x2 = jax.random.normal(kx2, (B, inc2, H, W), jnp.float32)
        params = init_params(kp, inc1, inc2)
        out = jax.block_until_ready(
            cross_atten_lite_split(x, x1, x2, params, max_tq=max_tq))
        ref = reference(x, x1, x2, params)
        # bf16 matmul operands (f32 acc) + approx reciprocal -> looser tolerance.
        np.testing.assert_allclose(np.asarray(out), np.asarray(ref),
                                   rtol=2e-2, atol=2e-2)

    k0, k1 = jax.random.split(key)
    # Even m2, single query tile (nq == 1).
    run_case(k0, B=2, inc1=32, inc2=16, H=8, W=8)
    # Odd m2 + tiled query axis (nq == 2): exercises the hoisted-scratch path
    # and the m2-parity branch of the shuffle decomposition.
    run_case(k1, B=2, inc1=32, inc2=12, H=16, W=16, max_tq=128)

    print("KERNEL_OK")
</pallas_src>

<mosaic_0001>
module attributes {stable_mosaic.version = 11 : i64} {
  func.func @_cross_atten_kernel(%arg0: i32, %arg1: i32, %arg2: memref<1x64x128xf32, #tpu.memory_space<vmem>>, %arg3: memref<1x64x32xbf16, #tpu.memory_space<vmem>>, %arg4: memref<1x64x32xbf16, #tpu.memory_space<vmem>>, %arg5: memref<1x64x16xbf16, #tpu.memory_space<vmem>>, %arg6: memref<32x8xbf16, #tpu.memory_space<vmem>>, %arg7: memref<1x8xf32, #tpu.memory_space<vmem>>, %arg8: memref<16x8xbf16, #tpu.memory_space<vmem>>, %arg9: memref<1x8xf32, #tpu.memory_space<vmem>>, %arg10: memref<32x16xbf16, #tpu.memory_space<vmem>>, %arg11: memref<1x16xf32, #tpu.memory_space<vmem>>, %arg12: memref<16x128xbf16, #tpu.memory_space<vmem>>, %arg13: memref<1x128xf32, #tpu.memory_space<vmem>>, %arg14: memref<1x64x128xf32, #tpu.memory_space<vmem>>, %arg15: memref<64x16xbf16, #tpu.memory_space<vmem>>, %arg16: memref<64x8xbf16, #tpu.memory_space<vmem>>, %arg17: memref<64x8xbf16, #tpu.memory_space<vmem>>) attributes {dimension_semantics = [#tpu.dimension_semantics<parallel>, #tpu.dimension_semantics<arbitrary>], iteration_bounds = array<i64: 2, 1>, scalar_prefetch = 0 : i64, scratch_operands = 3 : i64, tpu.core_type = #tpu.core_type<tc>, window_params = [{transform_indices = @transform_0, window_bounds = array<i64: 1, 64, 128>}, {transform_indices = @transform_1, window_bounds = array<i64: 1, 64, 32>}, {transform_indices = @transform_2, window_bounds = array<i64: 1, 64, 32>}, {transform_indices = @transform_3, window_bounds = array<i64: 1, 64, 16>}, {pipeline_mode = #tpu.pipeline_mode<synchronous>, transform_indices = @transform_4, window_bounds = array<i64: 32, 8>}, {pipeline_mode = #tpu.pipeline_mode<synchronous>, transform_indices = @transform_5, window_bounds = array<i64: 1, 8>}, {pipeline_mode = #tpu.pipeline_mode<synchronous>, transform_indices = @transform_6, window_bounds = array<i64: 16, 8>}, {pipeline_mode = #tpu.pipeline_mode<synchronous>, transform_indices = @transform_7, window_bounds = array<i64: 1, 8>}, {pipeline_mode = #tpu.pipeline_mode<synchronous>, transform_indices = @transform_8, window_bounds = array<i64: 32, 16>}, {pipeline_mode = #tpu.pipeline_mode<synchronous>, transform_indices = @transform_9, window_bounds = array<i64: 1, 16>}, {pipeline_mode = #tpu.pipeline_mode<synchronous>, transform_indices = @transform_10, window_bounds = array<i64: 16, 128>}, {pipeline_mode = #tpu.pipeline_mode<synchronous>, transform_indices = @transform_11, window_bounds = array<i64: 1, 128>}, {transform_indices = @transform_12, window_bounds = array<i64: 1, 64, 128>}]} {
    %c0_i32 = arith.constant 0 : i32
    %0 = arith.cmpi eq, %arg1, %c0_i32 : i32
    %1 = arith.extui %0 : i1 to i32
    %c0_i32_0 = arith.constant 0 : i32
    %2 = arith.cmpi ne, %1, %c0_i32_0 : i32
    scf.if %2 {
      %c0_25 = arith.constant 0 : index
      %c0_26 = arith.constant 0 : index
      %c0_27 = arith.constant 0 : index
      %52 = vector.load %arg4[%c0_25, %c0_26, %c0_27] : memref<1x64x32xbf16, #tpu.memory_space<vmem>>, vector<1x64x32xbf16>
      %53 = vector.shape_cast %52 : vector<1x64x32xbf16> to vector<64x32xbf16>
      %c0_28 = arith.constant 0 : index
      %c0_29 = arith.constant 0 : index
      %54 = vector.load %arg6[%c0_28, %c0_29] : memref<32x8xbf16, #tpu.memory_space<vmem>>, vector<32x8xbf16>
      %cst_30 = arith.constant dense<0.000000e+00> : vector<64x8xf32>
      %55 = tpu.matmul %53, %54, %cst_30 {dimension_numbers = #tpu.dot_dimension_numbers<[1], [0], [0], [1], [0, 0, 1, 1], [], []>} : vector<64x32xbf16>, vector<32x8xbf16>, vector<64x8xf32> -> vector<64x8xf32>
      %c0_31 = arith.constant 0 : index
      %c0_32 = arith.constant 0 : index
      %56 = vector.load %arg7[%c0_31, %c0_32] : memref<1x8xf32, #tpu.memory_space<vmem>>, vector<1x8xf32>
      %57 = vector.broadcast %56 : vector<1x8xf32> to vector<64x8xf32>
      %58 = arith.addf %55, %57 : vector<64x8xf32>
      %c0_33 = arith.constant 0 : index
      %c0_34 = arith.constant 0 : index
      %c0_35 = arith.constant 0 : index
      %59 = vector.load %arg5[%c0_33, %c0_34, %c0_35] : memref<1x64x16xbf16, #tpu.memory_space<vmem>>, vector<1x64x16xbf16>
      %60 = vector.shape_cast %59 : vector<1x64x16xbf16> to vector<64x16xbf16>
      %c0_36 = arith.constant 0 : index
      %c0_37 = arith.constant 0 : index
      %61 = vector.load %arg8[%c0_36, %c0_37] : memref<16x8xbf16, #tpu.memory_space<vmem>>, vector<16x8xbf16>
      %cst_38 = arith.constant dense<0.000000e+00> : vector<64x8xf32>
      %62 = tpu.matmul %60, %61, %cst_38 {dimension_numbers = #tpu.dot_dimension_numbers<[1], [0], [0], [1], [0, 0, 1, 1], [], []>} : vector<64x16xbf16>, vector<16x8xbf16>, vector<64x8xf32> -> vector<64x8xf32>
      %c0_39 = arith.constant 0 : index
      %c0_40 = arith.constant 0 : index
      %63 = vector.load %arg9[%c0_39, %c0_40] : memref<1x8xf32, #tpu.memory_space<vmem>>, vector<1x8xf32>
      %64 = vector.broadcast %63 : vector<1x8xf32> to vector<64x8xf32>
      %65 = arith.addf %62, %64 : vector<64x8xf32>
      %66 = vector.extract_strided_slice %58 {offsets = [0, 0], sizes = [64, 2], strides = [1, 1]} : vector<64x8xf32> to vector<64x2xf32>
      %67 = vector.extract_strided_slice %65 {offsets = [0, 0], sizes = [64, 2], strides = [1, 1]} : vector<64x8xf32> to vector<64x2xf32>
      %68 = vector.extract_strided_slice %58 {offsets = [0, 2], sizes = [64, 2], strides = [1, 1]} : vector<64x8xf32> to vector<64x2xf32>
      %69 = vector.extract_strided_slice %65 {offsets = [0, 2], sizes = [64, 2], strides = [1, 1]} : vector<64x8xf32> to vector<64x2xf32>
      %70 = vector.extract_strided_slice %58 {offsets = [0, 4], sizes = [64, 2], strides = [1, 1]} : vector<64x8xf32> to vector<64x2xf32>
      %71 = vector.extract_strided_slice %65 {offsets = [0, 4], sizes = [64, 2], strides = [1, 1]} : vector<64x8xf32> to vector<64x2xf32>
      %72 = vector.extract_strided_slice %58 {offsets = [0, 6], sizes = [64, 2], strides = [1, 1]} : vector<64x8xf32> to vector<64x2xf32>
      %73 = vector.extract_strided_slice %65 {offsets = [0, 6], sizes = [64, 2], strides = [1, 1]} : vector<64x8xf32> to vector<64x2xf32>
      %74 = tpu.concatenate %66, %67, %68, %69, %70, %71, %72, %73 in 1 : vector<64x2xf32>, vector<64x2xf32>, vector<64x2xf32>, vector<64x2xf32>, vector<64x2xf32>, vector<64x2xf32>, vector<64x2xf32>, vector<64x2xf32> -> vector<64x16xf32>
      %75 = arith.truncf %74 : vector<64x16xf32> to vector<64x16xbf16>
      %c0_41 = arith.constant 0 : index
      %c0_42 = arith.constant 0 : index
      %76 = vector.load %arg15[%c0_41, %c0_42] : memref<64x16xbf16, #tpu.memory_space<vmem>>, vector<64x16xbf16>
      tpu.vector_store %arg15[%c0_41, %c0_42], %75 {strides = array<i32>} : memref<64x16xbf16, #tpu.memory_space<vmem>>, vector<64x16xbf16>,
      %c0_43 = arith.constant 0 : index
      %c0_44 = arith.constant 0 : index
      %c0_45 = arith.constant 0 : index
      %77 = vector.load %arg3[%c0_43, %c0_44, %c0_45] : memref<1x64x32xbf16, #tpu.memory_space<vmem>>, vector<1x64x32xbf16>
      %78 = vector.shape_cast %77 : vector<1x64x32xbf16> to vector<64x32xbf16>
      %c0_46 = arith.constant 0 : index
      %c0_47 = arith.constant 0 : index
      %79 = vector.load %arg10[%c0_46, %c0_47] : memref<32x16xbf16, #tpu.memory_space<vmem>>, vector<32x16xbf16>
      %cst_48 = arith.constant dense<0.000000e+00> : vector<64x16xf32>
      %80 = tpu.matmul %78, %79, %cst_48 {dimension_numbers = #tpu.dot_dimension_numbers<[1], [0], [0], [1], [0, 0, 1, 1], [], []>} : vector<64x32xbf16>, vector<32x16xbf16>, vector<64x16xf32> -> vector<64x16xf32>
      %c0_49 = arith.constant 0 : index
      %c0_50 = arith.constant 0 : index
      %81 = vector.load %arg11[%c0_49, %c0_50] : memref<1x16xf32, #tpu.memory_space<vmem>>, vector<1x16xf32>
      %82 = vector.broadcast %81 : vector<1x16xf32> to vector<64x16xf32>
      %83 = arith.addf %80, %82 : vector<64x16xf32>
      %84 = vector.extract_strided_slice %83 {offsets = [0, 0], sizes = [64, 8], strides = [1, 1]} : vector<64x16xf32> to vector<64x8xf32>
      %85 = arith.truncf %84 : vector<64x8xf32> to vector<64x8xbf16>
      %c0_51 = arith.constant 0 : index
      %c0_52 = arith.constant 0 : index
      %86 = vector.load %arg16[%c0_51, %c0_52] : memref<64x8xbf16, #tpu.memory_space<vmem>>, vector<64x8xbf16>
      tpu.vector_store %arg16[%c0_51, %c0_52], %85 {strides = array<i32>} : memref<64x8xbf16, #tpu.memory_space<vmem>>, vector<64x8xbf16>,
      %87 = vector.extract_strided_slice %83 {offsets = [0, 8], sizes = [64, 8], strides = [1, 1]} : vector<64x16xf32> to vector<64x8xf32>
      %88 = arith.truncf %87 : vector<64x8xf32> to vector<64x8xbf16>
      %c0_53 = arith.constant 0 : index
      %c0_54 = arith.constant 0 : index
      %89 = vector.load %arg17[%c0_53, %c0_54] : memref<64x8xbf16, #tpu.memory_space<vmem>>, vector<64x8xbf16>
      tpu.vector_store %arg17[%c0_53, %c0_54], %88 {strides = array<i32>} : memref<64x8xbf16, #tpu.memory_space<vmem>>, vector<64x8xbf16>,
    } else {
    }
    %c64_i32 = arith.constant 64 : i32
    %3 = arith.muli %arg1, %c64_i32 : i32
    %4 = tpu.assume_multiple %3, 64 : i32
    %5 = arith.index_cast %4 : i32 to index
    %c4 = arith.constant 4 : index
    %6 = vector.load %arg15[%5, %c4] : memref<64x16xbf16, #tpu.memory_space<vmem>>, vector<64x4xbf16>
    %c0 = arith.constant 0 : index
    %c0_1 = arith.constant 0 : index
    %7 = vector.load %arg15[%c0, %c0_1] : memref<64x16xbf16, #tpu.memory_space<vmem>>, vector<64x4xbf16>
    %cst = arith.constant dense<0.000000e+00> : vector<64x64xf32>
    %8 = tpu.matmul %6, %7, %cst {dimension_numbers = #tpu.dot_dimension_numbers<[1], [1], [0], [0], [0, 0, 1, 0], [], []>} : vector<64x4xbf16>, vector<64x4xbf16>, vector<64x64xf32> -> vector<64x64xf32>
    %cst_2 = arith.constant dense<0xFF800000> : vector<64xf32>
    %9 = vector.multi_reduction <maximumf>, %8, %cst_2 [1] : vector<64x64xf32> to vector<64xf32>
    %10 = vector.shape_cast %9 : vector<64xf32> to vector<64x1xf32>
    %11 = vector.broadcast %10 : vector<64x1xf32> to vector<64x64xf32>
    %12 = arith.subf %8, %11 : vector<64x64xf32>
    %13 = math.exp %12 : vector<64x64xf32>
    %14 = arith.truncf %13 : vector<64x64xf32> to vector<64x64xbf16>
    %c0_3 = arith.constant 0 : index
    %c0_4 = arith.constant 0 : index
    %15 = vector.load %arg16[%c0_3, %c0_4] : memref<64x8xbf16, #tpu.memory_space<vmem>>, vector<64x8xbf16>
    %cst_5 = arith.constant dense<0.000000e+00> : vector<64x8xf32>
    %16 = tpu.matmul %14, %15, %cst_5 {dimension_numbers = #tpu.dot_dimension_numbers<[1], [0], [0], [1], [0, 0, 1, 1], [], []>} : vector<64x64xbf16>, vector<64x8xbf16>, vector<64x8xf32> -> vector<64x8xf32>
    %cst_6 = arith.constant dense<0.000000e+00> : vector<64xf32>
    %17 = vector.multi_reduction <add>, %13, %cst_6 [1] : vector<64x64xf32> to vector<64xf32>
    %18 = vector.shape_cast %17 : vector<64xf32> to vector<64x1xf32>
    %19 = tpu.reciprocal %18 {approx = true} : vector<64x1xf32> -> vector<64x1xf32>
    %20 = vector.broadcast %19 : vector<64x1xf32> to vector<64x8xf32>
    %21 = arith.mulf %16, %20 : vector<64x8xf32>
    %22 = arith.index_cast %4 : i32 to index
    %c12 = arith.constant 12 : index
    %23 = vector.load %arg15[%22, %c12] : memref<64x16xbf16, #tpu.memory_space<vmem>>, vector<64x4xbf16>
    %c0_7 = arith.constant 0 : index
    %c8 = arith.constant 8 : index
    %24 = vector.load %arg15[%c0_7, %c8] : memref<64x16xbf16, #tpu.memory_space<vmem>>, vector<64x4xbf16>
    %cst_8 = arith.constant dense<0.000000e+00> : vector<64x64xf32>
    %25 = tpu.matmul %23, %24, %cst_8 {dimension_numbers = #tpu.dot_dimension_numbers<[1], [1], [0], [0], [0, 0, 1, 0], [], []>} : vector<64x4xbf16>, vector<64x4xbf16>, vector<64x64xf32> -> vector<64x64xf32>
    %cst_9 = arith.constant dense<0xFF800000> : vector<64xf32>
    %26 = vector.multi_reduction <maximumf>, %25, %cst_9 [1] : vector<64x64xf32> to vector<64xf32>
    %27 = vector.shape_cast %26 : vector<64xf32> to vector<64x1xf32>
    %28 = vector.broadcast %27 : vector<64x1xf32> to vector<64x64xf32>
    %29 = arith.subf %25, %28 : vector<64x64xf32>
    %30 = math.exp %29 : vector<64x64xf32>
    %31 = arith.truncf %30 : vector<64x64xf32> to vector<64x64xbf16>
    %c0_10 = arith.constant 0 : index
    %c0_11 = arith.constant 0 : index
    %32 = vector.load %arg17[%c0_10, %c0_11] : memref<64x8xbf16, #tpu.memory_space<vmem>>, vector<64x8xbf16>
    %cst_12 = arith.constant dense<0.000000e+00> : vector<64x8xf32>
    %33 = tpu.matmul %31, %32, %cst_12 {dimension_numbers = #tpu.dot_dimension_numbers<[1], [0], [0], [1], [0, 0, 1, 1], [], []>} : vector<64x64xbf16>, vector<64x8xbf16>, vector<64x8xf32> -> vector<64x8xf32>
    %cst_13 = arith.constant dense<0.000000e+00> : vector<64xf32>
    %34 = vector.multi_reduction <add>, %30, %cst_13 [1] : vector<64x64xf32> to vector<64xf32>
    %35 = vector.shape_cast %34 : vector<64xf32> to vector<64x1xf32>
    %36 = tpu.reciprocal %35 {approx = true} : vector<64x1xf32> -> vector<64x1xf32>
    %37 = vector.broadcast %36 : vector<64x1xf32> to vector<64x8xf32>
    %38 = arith.mulf %33, %37 : vector<64x8xf32>
    %39 = tpu.concatenate %21, %38 in 1 : vector<64x8xf32>, vector<64x8xf32> -> vector<64x16xf32>
    %40 = arith.truncf %39 : vector<64x16xf32> to vector<64x16xbf16>
    %c0_14 = arith.constant 0 : index
    %c0_15 = arith.constant 0 : index
    %41 = vector.load %arg12[%c0_14, %c0_15] : memref<16x128xbf16, #tpu.memory_space<vmem>>, vector<16x128xbf16>
    %cst_16 = arith.constant dense<0.000000e+00> : vector<64x128xf32>
    %42 = tpu.matmul %40, %41, %cst_16 {dimension_numbers = #tpu.dot_dimension_numbers<[1], [0], [0], [1], [0, 0, 1, 1], [], []>} : vector<64x16xbf16>, vector<16x128xbf16>, vector<64x128xf32> -> vector<64x128xf32>
    %c0_17 = arith.constant 0 : index
    %c0_18 = arith.constant 0 : index
    %43 = vector.load %arg13[%c0_17, %c0_18] : memref<1x128xf32, #tpu.memory_space<vmem>>, vector<1x128xf32>
    %44 = vector.broadcast %43 : vector<1x128xf32> to vector<64x128xf32>
    %45 = arith.addf %42, %44 : vector<64x128xf32>
    %c0_19 = arith.constant 0 : index
    %c0_20 = arith.constant 0 : index
    %c0_21 = arith.constant 0 : index
    %46 = vector.load %arg2[%c0_19, %c0_20, %c0_21] : memref<1x64x128xf32, #tpu.memory_space<vmem>>, vector<1x64x128xf32>
    %47 = vector.shape_cast %46 : vector<1x64x128xf32> to vector<64x128xf32>
    %48 = arith.addf %45, %47 : vector<64x128xf32>
    %c0_22 = arith.constant 0 : index
    %c0_23 = arith.constant 0 : index
    %c0_24 = arith.constant 0 : index
    %49 = vector.load %arg14[%c0_22, %c0_23, %c0_24] : memref<1x64x128xf32, #tpu.memory_space<vmem>>, vector<1x64x128xf32>
    %50 = vector.shape_cast %49 : vector<1x64x128xf32> to vector<64x128xf32>
    %51 = vector.shape_cast %48 : vector<64x128xf32> to vector<1x64x128xf32>
    tpu.vector_store %arg14[%c0_22, %c0_23, %c0_24], %51 {strides = array<i32>} : memref<1x64x128xf32, #tpu.memory_space<vmem>>, vector<1x64x128xf32>,
    return
  }
  func.func @transform_0(%arg0: i32, %arg1: i32) -> (i32, i32, i32) {
    %c0_i32 = arith.constant 0 : i32
    %c0_i32_0 = arith.constant 0 : i32
    return %arg0, %arg1, %c0_i32 : i32, i32, i32
  }
  func.func @transform_1(%arg0: i32, %arg1: i32) -> (i32, i32, i32) {
    %c0_i32 = arith.constant 0 : i32
    %c0_i32_0 = arith.constant 0 : i32
    %c0_i32_1 = arith.constant 0 : i32
    return %arg0, %c0_i32, %c0_i32_0 : i32, i32, i32
  }
  func.func @transform_2(%arg0: i32, %arg1: i32) -> (i32, i32, i32) {
    %c0_i32 = arith.constant 0 : i32
    %c0_i32_0 = arith.constant 0 : i32
    %c0_i32_1 = arith.constant 0 : i32
    return %arg0, %c0_i32, %c0_i32_0 : i32, i32, i32
  }
  func.func @transform_3(%arg0: i32, %arg1: i32) -> (i32, i32, i32) {
    %c0_i32 = arith.constant 0 : i32
    %c0_i32_0 = arith.constant 0 : i32
    %c0_i32_1 = arith.constant 0 : i32
    return %arg0, %c0_i32, %c0_i32_0 : i32, i32, i32
  }
  func.func @transform_4(%arg0: i32, %arg1: i32) -> (i32, i32) {
    %c0_i32 = arith.constant 0 : i32
    %c0_i32_0 = arith.constant 0 : i32
    %c0_i32_1 = arith.constant 0 : i32
    return %c0_i32, %c0_i32_0 : i32, i32
  }
  func.func @transform_5(%arg0: i32, %arg1: i32) -> (i32, i32) {
    %c0_i32 = arith.constant 0 : i32
    %c0_i32_0 = arith.constant 0 : i32
    %c0_i32_1 = arith.constant 0 : i32
    return %c0_i32, %c0_i32_0 : i32, i32
  }
  func.func @transform_6(%arg0: i32, %arg1: i32) -> (i32, i32) {
    %c0_i32 = arith.constant 0 : i32
    %c0_i32_0 = arith.constant 0 : i32
    %c0_i32_1 = arith.constant 0 : i32
    return %c0_i32, %c0_i32_0 : i32, i32
  }
  func.func @transform_7(%arg0: i32, %arg1: i32) -> (i32, i32) {
    %c0_i32 = arith.constant 0 : i32
    %c0_i32_0 = arith.constant 0 : i32
    %c0_i32_1 = arith.constant 0 : i32
    return %c0_i32, %c0_i32_0 : i32, i32
  }
  func.func @transform_8(%arg0: i32, %arg1: i32) -> (i32, i32) {
    %c0_i32 = arith.constant 0 : i32
    %c0_i32_0 = arith.constant 0 : i32
    %c0_i32_1 = arith.constant 0 : i32
    return %c0_i32, %c0_i32_0 : i32, i32
  }
  func.func @transform_9(%arg0: i32, %arg1: i32) -> (i32, i32) {
    %c0_i32 = arith.constant 0 : i32
    %c0_i32_0 = arith.constant 0 : i32
    %c0_i32_1 = arith.constant 0 : i32
    return %c0_i32, %c0_i32_0 : i32, i32
  }
  func.func @transform_10(%arg0: i32, %arg1: i32) -> (i32, i32) {
    %c0_i32 = arith.constant 0 : i32
    %c0_i32_0 = arith.constant 0 : i32
    %c0_i32_1 = arith.constant 0 : i32
    return %c0_i32, %c0_i32_0 : i32, i32
  }
  func.func @transform_11(%arg0: i32, %arg1: i32) -> (i32, i32) {
    %c0_i32 = arith.constant 0 : i32
    %c0_i32_0 = arith.constant 0 : i32
    %c0_i32_1 = arith.constant 0 : i32
    return %c0_i32, %c0_i32_0 : i32, i32
  }
  func.func @transform_12(%arg0: i32, %arg1: i32) -> (i32, i32, i32) {
    %c0_i32 = arith.constant 0 : i32
    %c0_i32_0 = arith.constant 0 : i32
    return %arg0, %arg1, %c0_i32 : i32, i32, i32
  }
}

</mosaic_0001>

<llo_original>
// kernel: tpu_custom_call.1
$region0: #{tpu_custom_call.1}
  #allocation0 [shape = 'u32[]', space=smem, size = 0x4, offset = 0x4, fixed_abs, tag = 'smem constant byte address 0x4 - core index']
  #allocation1 [shape = 'u32[72,128]{1,0:T(1,128)}', space=vmem, size = 0x9000, scoped, tag = 'internal scratch']
  #allocation2 [shape = 'bf16[64,16]{1,0:T(8,128)(2,1)}', space=vmem, size = 0x4000, scoped, tag = 'scratch operand']
  #allocation3 [shape = 'bf16[64,8]{1,0:T(8,128)(2,1)}', space=vmem, size = 0x4000, scoped, tag = 'scratch operand']
  #allocation4 [shape = 'bf16[64,8]{1,0:T(8,128)(2,1)}', space=vmem, size = 0x4000, scoped, tag = 'scratch operand']
  %s0 = inlined_call_operand.vmem [shape: f32[2,64,128], index: 0, kind: input, shape index: {}]
  %s1 = inlined_call_operand.vmem [shape: bf16[2,64,32], index: 1, kind: input, shape index: {}]
  %s2 = inlined_call_operand.vmem [shape: bf16[2,64,32], index: 2, kind: input, shape index: {}]
  %s3 = inlined_call_operand.vmem [shape: bf16[2,64,16], index: 3, kind: input, shape index: {}]
  %s4 = inlined_call_operand.vmem [shape: bf16[32,8], index: 4, kind: input, shape index: {}]
  %s5 = inlined_call_operand.vmem [shape: f32[1,8], index: 5, kind: input, shape index: {}]
  %s6 = inlined_call_operand.vmem [shape: bf16[16,8], index: 6, kind: input, shape index: {}]
  %s7 = inlined_call_operand.vmem [shape: f32[1,8], index: 7, kind: input, shape index: {}]
  %s8 = inlined_call_operand.vmem [shape: bf16[32,16], index: 8, kind: input, shape index: {}]
  %s9 = inlined_call_operand.vmem [shape: f32[1,16], index: 9, kind: input, shape index: {}]
  %s10 = inlined_call_operand.vmem [shape: bf16[16,128], index: 10, kind: input, shape index: {}]
  %s11 = inlined_call_operand.vmem [shape: f32[1,128], index: 11, kind: input, shape index: {}]
  %s12 = inlined_call_operand.hbm [shape: f32[2,64,128], index: 12, kind: output, shape index: {}]
  %s13 = sld [smem:[#allocation0]]
  $region85: #{tpu_custom_call.1} parent=0
    _
  %s15 = ssub.s32 1, %s13
  %s16 = scalar_select 0, %s15, %s13
  $region1: #{tpu_custom_call.1} parent=0
    #allocation5 [shape = 'u8[65536]{0}', space=vmem, size = 0x10000, scoped, tag = 'output window, operand 0']
    #allocation6 [shape = 's32[2]{0}', space=sflag, size = 0x8, scoped, tag = 'scoped memory for tpu_custom_call.1']
    %17 = vsyncpa [#allocation6], 0
    %s18 = scalar_lea.sflag [#allocation6], 1
    %19 = vsyncpa %s18, 0
    loop: start=0, step=1, limit=4
    $region2: #{tpu_custom_call.1} parent=1 // loop_pre_header
      _
    $region3: #{tpu_custom_call.1} parent=1 // loop_header
      %s21 = sphi 0, %s25
      %p22 = scmp.ge.s32.totalorder %s21, 4
      %s28 = sphi 0, %s40
      %s29 = sphi 0, %s36
      %s30 = sphi 0, %s28
      %s31 = sphi 0, %s29
      %s32 = sphi 0, %s30
      %s33 = sphi 0, %s31
      %s45 = sphi 0, %s47
      %s48 = sphi 0, %s45
      %s49 = sphi 0, %s48
      %s65 = sphi 0, %s49
      %s71 = sphi 0, %s73
      %s74 = sphi 0, %s71
      %s75 = sphi 0, %s74
      %s91 = sphi 0, %s75
      %s97 = sphi 0, %s99
      %s100 = sphi 0, %s97
      %s101 = sphi 0, %s100
      %s117 = sphi 0, %s101
      %s123 = sphi 0, %s125
      %s126 = sphi 0, %s123
      %s127 = sphi 0, %s126
      %s143 = sphi 0, %s127
      %s147 = sphi 0, %s147
      %s149 = sphi 0, %s147
      %s150 = sphi 0, %s149
      %s164 = sphi 0, %s150
      %s168 = sphi 0, %s168
      %s170 = sphi 0, %s168
      %s171 = sphi 0, %s170
      %s185 = sphi 0, %s171
      %s189 = sphi 0, %s189
      %s191 = sphi 0, %s189
      %s192 = sphi 0, %s191
      %s206 = sphi 0, %s192
      %s210 = sphi 0, %s210
      %s212 = sphi 0, %s210
      %s213 = sphi 0, %s212
      %s227 = sphi 0, %s213
      %s231 = sphi 0, %s231
      %s233 = sphi 0, %s231
      %s234 = sphi 0, %s233
      %s248 = sphi 0, %s234
      %s252 = sphi 0, %s252
      %s254 = sphi 0, %s252
      %s255 = sphi 0, %s254
      %s269 = sphi 0, %s255
      %s273 = sphi 0, %s273
      %s275 = sphi 0, %s273
      %s276 = sphi 0, %s275
      %s290 = sphi 0, %s276
      %s294 = sphi 0, %s294
      %s296 = sphi 0, %s294
      %s297 = sphi 0, %s296
      %s311 = sphi 0, %s297
      %s319 = sphi 0, %s321
      %s322 = sphi 0, %s319
      %s323 = sphi 0, %s322
      %s339 = sphi 0, %s323
    $region4: #{tpu_custom_call.1} parent=1 // loop_header_branch
      %24 = sbr.rel (%p22) target = $region8
    $region5: #{tpu_custom_call.1} parent=1 // loop_body
      %s26 = ssub.s32 %s21, 1
      %s27 = ssub.s32 %s21, 2
      %s34 = sadd.s32 1, %s29
      %p35 = scmp.ge.s32.totalorder %s34, 1
      %s36 = scalar_select %p35, 0, %s34
      %s37 = sadd.s32 1, %s28
      %s38 = scalar_select %p35, %s37, %s28
      %p39 = scmp.ge.s32.totalorder %s38, 2
      %s40 = scalar_select %p39, 0, %s38
      %s41 = ssub.s32 %s28, %s40
      %s42 = ssub.s32 %s29, %s36
      %s43 = sor.u32 %s41, %s42
      %p44 = scmp.eq.s32.totalorder %s43, 0
      %s46 = sadd.s32 %s45, 1
      %s47 = scalar_select %p44, %s45, %s46
      %p50 = pneg %p44
      %p51 = scmp.eq.s32.totalorder %s21, 1
      %p52 = por %p50, %p51
      %p53 = scmp.ne.s32.totalorder %s45, %s48
      %p54 = scmp.eq.s32.totalorder %s21, 0
      %p55 = por %p53, %p54
      %p56 = scmp.ne.s32.totalorder %s45, %s48
      %p57 = scmp.eq.s32.totalorder %s26, 1
      %p58 = por %p56, %p57
      %p59 = scmp.ne.s32.totalorder %s48, %s49
      %p60 = scmp.eq.s32.totalorder %s26, 0
      %p61 = por %p59, %p60
      %p62 = scmp.ne.s32.totalorder %s48, %s49
      %p63 = scmp.eq.s32.totalorder %s27, 1
      %p64 = por %p62, %p63
      %p66 = scmp.ne.s32.totalorder %s49, %s65
      %p67 = scmp.eq.s32.totalorder %s27, 0
      %p68 = por %p66, %p67
      %s69 = ssub.s32 %s28, %s40
      %p70 = scmp.eq.s32.totalorder %s69, 0
      %s72 = sadd.s32 %s71, 1
      %s73 = scalar_select %p70, %s71, %s72
      %p76 = pneg %p70
      %p77 = scmp.eq.s32.totalorder %s21, 1
      %p78 = por %p76, %p77
      %p79 = scmp.ne.s32.totalorder %s71, %s74
      %p80 = scmp.eq.s32.totalorder %s21, 0
      %p81 = por %p79, %p80
      %p82 = scmp.ne.s32.totalorder %s71, %s74
      %p83 = scmp.eq.s32.totalorder %s26, 1
      %p84 = por %p82, %p83
      %p85 = scmp.ne.s32.totalorder %s74, %s75
      %p86 = scmp.eq.s32.totalorder %s26, 0
      %p87 = por %p85, %p86
      %p88 = scmp.ne.s32.totalorder %s74, %s75
      %p89 = scmp.eq.s32.totalorder %s27, 1
      %p90 = por %p88, %p89
      %p92 = scmp.ne.s32.totalorder %s75, %s91
      %p93 = scmp.eq.s32.totalorder %s27, 0
      %p94 = por %p92, %p93
      %s95 = ssub.s32 %s28, %s40
      %p96 = scmp.eq.s32.totalorder %s95, 0
      %s98 = sadd.s32 %s97, 1
      %s99 = scalar_select %p96, %s97, %s98
      %p102 = pneg %p96
      %p103 = scmp.eq.s32.totalorder %s21, 1
      %p104 = por %p102, %p103
      %p105 = scmp.ne.s32.totalorder %s97, %s100
      %p106 = scmp.eq.s32.totalorder %s21, 0
      %p107 = por %p105, %p106
      %p108 = scmp.ne.s32.totalorder %s97, %s100
      %p109 = scmp.eq.s32.totalorder %s26, 1
      %p110 = por %p108, %p109
      %p111 = scmp.ne.s32.totalorder %s100, %s101
      %p112 = scmp.eq.s32.totalorder %s26, 0
      %p113 = por %p111, %p112
      %p114 = scmp.ne.s32.totalorder %s100, %s101
      %p115 = scmp.eq.s32.totalorder %s27, 1
      %p116 = por %p114, %p115
      %p118 = scmp.ne.s32.totalorder %s101, %s117
      %p119 = scmp.eq.s32.totalorder %s27, 0
      %p120 = por %p118, %p119
      %s121 = ssub.s32 %s28, %s40
      %p122 = scmp.eq.s32.totalorder %s121, 0
      %s124 = sadd.s32 %s123, 1
      %s125 = scalar_select %p122, %s123, %s124
      %p128 = pneg %p122
      %p129 = scmp.eq.s32.totalorder %s21, 1
      %p130 = por %p128, %p129
      %p131 = scmp.ne.s32.totalorder %s123, %s126
      %p132 = scmp.eq.s32.totalorder %s21, 0
      %p133 = por %p131, %p132
      %p134 = scmp.ne.s32.totalorder %s123, %s126
      %p135 = scmp.eq.s32.totalorder %s26, 1
      %p136 = por %p134, %p135
      %p137 = scmp.ne.s32.totalorder %s126, %s127
      %p138 = scmp.eq.s32.totalorder %s26, 0
      %p139 = por %p137, %p138
      %p140 = scmp.ne.s32.totalorder %s126, %s127
      %p141 = scmp.eq.s32.totalorder %s27, 1
      %p142 = por %p140, %p141
      %p144 = scmp.ne.s32.totalorder %s127, %s143
      %p145 = scmp.eq.s32.totalorder %s27, 0
      %p146 = por %p144, %p145
      %s148 = sadd.s32 %s147, 1
      %p151 = scmp.eq.s32.totalorder %s21, 1
      %p152 = scmp.ne.s32.totalorder %s147, %s149
      %p153 = scmp.eq.s32.totalorder %s21, 0
      %p154 = por %p152, %p153
      %p155 = scmp.ne.s32.totalorder %s147, %s149
      %p156 = scmp.eq.s32.totalorder %s26, 1
      %p157 = por %p155, %p156
      %p158 = scmp.ne.s32.totalorder %s149, %s150
      %p159 = scmp.eq.s32.totalorder %s26, 0
      %p160 = por %p158, %p159
      %p161 = scmp.ne.s32.totalorder %s149, %s150
      %p162 = scmp.eq.s32.totalorder %s27, 1
      %p163 = por %p161, %p162
      %p165 = scmp.ne.s32.totalorder %s150, %s164
      %p166 = scmp.eq.s32.totalorder %s27, 0
      %p167 = por %p165, %p166
      %s169 = sadd.s32 %s168, 1
      %p172 = scmp.eq.s32.totalorder %s21, 1
      %p173 = scmp.ne.s32.totalorder %s168, %s170
      %p174 = scmp.eq.s32.totalorder %s21, 0
      %p175 = por %p173, %p174
      %p176 = scmp.ne.s32.totalorder %s168, %s170
      %p177 = scmp.eq.s32.totalorder %s26, 1
      %p178 = por %p176, %p177
      %p179 = scmp.ne.s32.totalorder %s170, %s171
      %p180 = scmp.eq.s32.totalorder %s26, 0
      %p181 = por %p179, %p180
      %p182 = scmp.ne.s32.totalorder %s170, %s171
      %p183 = scmp.eq.s32.totalorder %s27, 1
      %p184 = por %p182, %p183
      %p186 = scmp.ne.s32.totalorder %s171, %s185
      %p187 = scmp.eq.s32.totalorder %s27, 0
      %p188 = por %p186, %p187
      %s190 = sadd.s32 %s189, 1
      %p193 = scmp.eq.s32.totalorder %s21, 1
      %p194 = scmp.ne.s32.totalorder %s189, %s191
      %p195 = scmp.eq.s32.totalorder %s21, 0
      %p196 = por %p194, %p195
      %p197 = scmp.ne.s32.totalorder %s189, %s191
      %p198 = scmp.eq.s32.totalorder %s26, 1
      %p199 = por %p197, %p198
      %p200 = scmp.ne.s32.totalorder %s191, %s192
      %p201 = scmp.eq.s32.totalorder %s26, 0
      %p202 = por %p200, %p201
      %p203 = scmp.ne.s32.totalorder %s191, %s192
      %p204 = scmp.eq.s32.totalorder %s27, 1
      %p205 = por %p203, %p204
      %p207 = scmp.ne.s32.totalorder %s192, %s206
      %p208 = scmp.eq.s32.totalorder %s27, 0
      %p209 = por %p207, %p208
      %s211 = sadd.s32 %s210, 1
      %p214 = scmp.eq.s32.totalorder %s21, 1
      %p215 = scmp.ne.s32.totalorder %s210, %s212
      %p216 = scmp.eq.s32.totalorder %s21, 0
      %p217 = por %p215, %p216
      %p218 = scmp.ne.s32.totalorder %s210, %s212
      %p219 = scmp.eq.s32.totalorder %s26, 1
      %p220 = por %p218, %p219
      %p221 = scmp.ne.s32.totalorder %s212, %s213
      %p222 = scmp.eq.s32.totalorder %s26, 0
      %p223 = por %p221, %p222
      %p224 = scmp.ne.s32.totalorder %s212, %s213
      %p225 = scmp.eq.s32.totalorder %s27, 1
      %p226 = por %p224, %p225
      %p228 = scmp.ne.s32.totalorder %s213, %s227
      %p229 = scmp.eq.s32.totalorder %s27, 0
      %p230 = por %p228, %p229
      %s232 = sadd.s32 %s231, 1
      %p235 = scmp.eq.s32.totalorder %s21, 1
      %p236 = scmp.ne.s32.totalorder %s231, %s233
      %p237 = scmp.eq.s32.totalorder %s21, 0
      %p238 = por %p236, %p237
      %p239 = scmp.ne.s32.totalorder %s231, %s233
      %p240 = scmp.eq.s32.totalorder %s26, 1
      %p241 = por %p239, %p240
      %p242 = scmp.ne.s32.totalorder %s233, %s234
      %p243 = scmp.eq.s32.totalorder %s26, 0
      %p244 = por %p242, %p243
      %p245 = scmp.ne.s32.totalorder %s233, %s234
      %p246 = scmp.eq.s32.totalorder %s27, 1
      %p247 = por %p245, %p246
      %p249 = scmp.ne.s32.totalorder %s234, %s248
      %p250 = scmp.eq.s32.totalorder %s27, 0
      %p251 = por %p249, %p250
      %s253 = sadd.s32 %s252, 1
      %p256 = scmp.eq.s32.totalorder %s21, 1
      %p257 = scmp.ne.s32.totalorder %s252, %s254
      %p258 = scmp.eq.s32.totalorder %s21, 0
      %p259 = por %p257, %p258
      %p260 = scmp.ne.s32.totalorder %s252, %s254
      %p261 = scmp.eq.s32.totalorder %s26, 1
      %p262 = por %p260, %p261
      %p263 = scmp.ne.s32.totalorder %s254, %s255
      %p264 = scmp.eq.s32.totalorder %s26, 0
      %p265 = por %p263, %p264
      %p266 = scmp.ne.s32.totalorder %s254, %s255
      %p267 = scmp.eq.s32.totalorder %s27, 1
      %p268 = por %p266, %p267
      %p270 = scmp.ne.s32.totalorder %s255, %s269
      %p271 = scmp.eq.s32.totalorder %s27, 0
      %p272 = por %p270, %p271
      %s274 = sadd.s32 %s273, 1
      %p277 = scmp.eq.s32.totalorder %s21, 1
      %p278 = scmp.ne.s32.totalorder %s273, %s275
      %p279 = scmp.eq.s32.totalorder %s21, 0
      %p280 = por %p278, %p279
      %p281 = scmp.ne.s32.totalorder %s273, %s275
      %p282 = scmp.eq.s32.totalorder %s26, 1
      %p283 = por %p281, %p282
      %p284 = scmp.ne.s32.totalorder %s275, %s276
      %p285 = scmp.eq.s32.totalorder %s26, 0
      %p286 = por %p284, %p285
      %p287 = scmp.ne.s32.totalorder %s275, %s276
      %p288 = scmp.eq.s32.totalorder %s27, 1
      %p289 = por %p287, %p288
      %p291 = scmp.ne.s32.totalorder %s276, %s290
      %p292 = scmp.eq.s32.totalorder %s27, 0
      %p293 = por %p291, %p292
      %s295 = sadd.s32 %s294, 1
      %p298 = scmp.eq.s32.totalorder %s21, 1
      %p299 = scmp.ne.s32.totalorder %s294, %s296
      %p300 = scmp.eq.s32.totalorder %s21, 0
      %p301 = por %p299, %p300
      %p302 = scmp.ne.s32.totalorder %s294, %s296
      %p303 = scmp.eq.s32.totalorder %s26, 1
      %p304 = por %p302, %p303
      %p305 = scmp.ne.s32.totalorder %s296, %s297
      %p306 = scmp.eq.s32.totalorder %s26, 0
      %p307 = por %p305, %p306
      %p308 = scmp.ne.s32.totalorder %s296, %s297
      %p309 = scmp.eq.s32.totalorder %s27, 1
      %p310 = por %p308, %p309
      %p312 = scmp.ne.s32.totalorder %s297, %s311
      %p313 = scmp.eq.s32.totalorder %s27, 0
      %p314 = por %p312, %p313
      %s315 = ssub.s32 %s28, %s40
      %s316 = ssub.s32 %s29, %s36
      %s317 = sor.u32 %s315, %s316
      %p318 = scmp.eq.s32.totalorder %s317, 0
      %s320 = sadd.s32 %s319, 1
      %s321 = scalar_select %p318, %s319, %s320
      %p324 = pneg %p318
      %p325 = scmp.eq.s32.totalorder %s21, 1
      %p326 = por %p324, %p325
      %p327 = scmp.ne.s32.totalorder %s319, %s322
      %p328 = scmp.eq.s32.totalorder %s21, 0
      %p329 = por %p327, %p328
      %p330 = scmp.ne.s32.totalorder %s319, %s322
      %p331 = scmp.eq.s32.totalorder %s26, 1
      %p332 = por %p330, %p331
      %p333 = scmp.ne.s32.totalorder %s322, %s323
      %p334 = scmp.eq.s32.totalorder %s26, 0
      %p335 = por %p333, %p334
      %p336 = scmp.ne.s32.totalorder %s322, %s323
      %p337 = scmp.eq.s32.totalorder %s27, 1
      %p338 = por %p336, %p337
      %p340 = scmp.ne.s32.totalorder %s323, %s339
      %p341 = scmp.eq.s32.totalorder %s27, 0
      %p342 = por %p340, %p341
      %p343 = scmp.le.s32.totalorder 1, %s21
      %p344 = scmp.lt.s32.totalorder %s21, 3
      %p345 = pnand %p343, %p344
      %p346 = pneg %p345
      // Predicated region
      $region9: #{tpu_custom_call.1} parent=5 // pred_check
        _
      $region10: #{tpu_custom_call.1} parent=5 // pred_check_branch
        %348 = sbr.rel (%p345) target = $region12
      $region11: #{tpu_custom_call.1} parent=5 // pred_region
        %s349 = ssub.s32 %s21, 1
        // Predicated region
        $region13: #{tpu_custom_call.1} parent=11 // pred_check
          %p350 = pneg %p160
        $region14: #{tpu_custom_call.1} parent=11 // pred_check_branch
          %352 = sbr.rel (%p350) target = $region16
        $region15: #{tpu_custom_call.1} parent=11 // pred_region
          _
        $region16: #{tpu_custom_call.1} parent=11 // pred_fallthru
          _
        // Predicated region
        $region17: #{tpu_custom_call.1} parent=11 // pred_check
          %p353 = pneg %p181
        $region18: #{tpu_custom_call.1} parent=11 // pred_check_branch
          %355 = sbr.rel (%p353) target = $region20
        $region19: #{tpu_custom_call.1} parent=11 // pred_region
          _
        $region20: #{tpu_custom_call.1} parent=11 // pred_fallthru
          _
        // Predicated region
        $region21: #{tpu_custom_call.1} parent=11 // pred_check
          %p356 = pneg %p202
        $region22: #{tpu_custom_call.1} parent=11 // pred_check_branch
          %358 = sbr.rel (%p356) target = $region24
        $region23: #{tpu_custom_call.1} parent=11 // pred_region
          _
        $region24: #{tpu_custom_call.1} parent=11 // pred_fallthru
          _
        // Predicated region
        $region25: #{tpu_custom_call.1} parent=11 // pred_check
          %p359 = pneg %p223
        $region26: #{tpu_custom_call.1} parent=11 // pred_check_branch
          %361 = sbr.rel (%p359) target = $region28
        $region27: #{tpu_custom_call.1} parent=11 // pred_region
          _
        $region28: #{tpu_custom_call.1} parent=11 // pred_fallthru
          _
        // Predicated region
        $region29: #{tpu_custom_call.1} parent=11 // pred_check
          %p362 = pneg %p244
        $region30: #{tpu_custom_call.1} parent=11 // pred_check_branch
          %364 = sbr.rel (%p362) target = $region32
        $region31: #{tpu_custom_call.1} parent=11 // pred_region
          _
        $region32: #{tpu_custom_call.1} parent=11 // pred_fallthru
          _
        // Predicated region
        $region33: #{tpu_custom_call.1} parent=11 // pred_check
          %p365 = pneg %p265
        $region34: #{tpu_custom_call.1} parent=11 // pred_check_branch
          %367 = sbr.rel (%p365) target = $region36
        $region35: #{tpu_custom_call.1} parent=11 // pred_region
          _
        $region36: #{tpu_custom_call.1} parent=11 // pred_fallthru
          _
        // Predicated region
        $region37: #{tpu_custom_call.1} parent=11 // pred_check
          %p368 = pneg %p286
        $region38: #{tpu_custom_call.1} parent=11 // pred_check_branch
          %370 = sbr.rel (%p368) target = $region40
        $region39: #{tpu_custom_call.1} parent=11 // pred_region
          _
        $region40: #{tpu_custom_call.1} parent=11 // pred_fallthru
          _
        // Predicated region
        $region41: #{tpu_custom_call.1} parent=11 // pred_check
          %p371 = pneg %p307
        $region42: #{tpu_custom_call.1} parent=11 // pred_check_branch
          %373 = sbr.rel (%p371) target = $region44
        $region43: #{tpu_custom_call.1} parent=11 // pred_region
          _
        $region44: #{tpu_custom_call.1} parent=11 // pred_fallthru
          _
      $region12: #{tpu_custom_call.1} parent=5 // pred_fallthru
        _
      %p374 = scmp.lt.s32.totalorder %s21, 2
      // Predicated region
      $region45: #{tpu_custom_call.1} parent=5 // pred_check
        %p375 = pneg %p374
      $region46: #{tpu_custom_call.1} parent=5 // pred_check_branch
        %377 = sbr.rel (%p375) target = $region48
      $region47: #{tpu_custom_call.1} parent=5 // pred_region
        // Predicated region
        $region49: #{tpu_custom_call.1} parent=47 // pred_check
          %p378 = pneg %p55
        $region50: #{tpu_custom_call.1} parent=47 // pred_check_branch
          %380 = sbr.rel (%p378) target = $region52
        $region51: #{tpu_custom_call.1} parent=47 // pred_region
          %s381 = smul.u32 8, %s29
          %p382 = scmp.lt.s32.totalorder %s28, 1
          %s383 = scalar_select %p382, %s28, 1
          %p384 = scmp.lt.s32.totalorder %s381, 7
          %s385 = scalar_select %p384, %s381, 7
          %s386 = smul.addr %s383, 8
          %s387 = sadd.s32 %s385, %s386
          %s388 = smul.addr %s387, 8
          %s389 = scalar_lea.vmem %s0, %s388
          %s390 = smul.u32 8, %s29
        $region52: #{tpu_custom_call.1} parent=47 // pred_fallthru
          _
        // Predicated region
        $region53: #{tpu_custom_call.1} parent=47 // pred_check
          %p391 = pneg %p81
        $region54: #{tpu_custom_call.1} parent=47 // pred_check_branch
          %393 = sbr.rel (%p391) target = $region56
        $region55: #{tpu_custom_call.1} parent=47 // pred_region
          %p394 = scmp.lt.s32.totalorder %s28, 1
          %s395 = scalar_select %p394, %s28, 1
          %s396 = smul.addr %s395, 8
          %s397 = smul.addr %s396, 4
          %s398 = scalar_lea.vmem %s1, %s397
        $region56: #{tpu_custom_call.1} parent=47 // pred_fallthru
          _
        // Predicated region
        $region57: #{tpu_custom_call.1} parent=47 // pred_check
          %p399 = pneg %p107
        $region58: #{tpu_custom_call.1} parent=47 // pred_check_branch
          %401 = sbr.rel (%p399) target = $region60
        $region59: #{tpu_custom_call.1} parent=47 // pred_region
          %p402 = scmp.lt.s32.totalorder %s28, 1
          %s403 = scalar_select %p402, %s28, 1
          %s404 = smul.addr %s403, 8
          %s405 = smul.addr %s404, 4
          %s406 = scalar_lea.vmem %s2, %s405
        $region60: #{tpu_custom_call.1} parent=47 // pred_fallthru
          _
        // Predicated region
        $region61: #{tpu_custom_call.1} parent=47 // pred_check
          %p407 = pneg %p133
        $region62: #{tpu_custom_call.1} parent=47 // pred_check_branch
          %409 = sbr.rel (%p407) target = $region64
        $region63: #{tpu_custom_call.1} parent=47 // pred_region
          %p410 = scmp.lt.s32.totalorder %s28, 1
          %s411 = scalar_select %p410, %s28, 1
          %s412 = smul.addr %s411, 8
          %s413 = smul.addr %s412, 4
          %s414 = scalar_lea.vmem %s3, %s413
        $region64: #{tpu_custom_call.1} parent=47 // pred_fallthru
          _
      $region48: #{tpu_custom_call.1} parent=5 // pred_fallthru
        _
      %p415 = scmp.le.s32.totalorder 1, %s21
      %p416 = scmp.lt.s32.totalorder %s21, 3
      %p417 = pnand %p415, %p416
      %p418 = pneg %p417
      // Predicated region
      $region65: #{tpu_custom_call.1} parent=5 // pred_check
        _
      $region66: #{tpu_custom_call.1} parent=5 // pred_check_branch
        %420 = sbr.rel (%p417) target = $region68
      $region67: #{tpu_custom_call.1} parent=5 // pred_region
        %s421 = ssub.s32 %s21, 1
        %s422 = smul.u32 8, %s31
        %p423 = scmp.lt.s32.totalorder %s30, 1
        %s424 = scalar_select %p423, %s30, 1
        %p425 = scmp.lt.s32.totalorder %s422, 7
        %s426 = scalar_select %p425, %s422, 7
        %s427 = smul.addr %s424, 8
        %s428 = sadd.s32 %s426, %s427
        %s429 = smul.addr %s428, 8
        %s430 = scalar_lea.vmem %s0, %s429
        %p431 = pneg %p61
        %p432 = pneg %p58
        %p433 = scmp.lt.s32.totalorder %s30, 1
        %s434 = scalar_select %p433, %s30, 1
        %s435 = smul.addr %s434, 8
        %s436 = smul.addr %s435, 4
        %s437 = scalar_lea.vmem %s1, %s436
        %p438 = pneg %p87
        %p439 = pneg %p84
        %p440 = scmp.lt.s32.totalorder %s30, 1
        %s441 = scalar_select %p440, %s30, 1
        %s442 = smul.addr %s441, 8
        %s443 = smul.addr %s442, 4
        %s444 = scalar_lea.vmem %s2, %s443
        %p445 = pneg %p113
        %p446 = pneg %p110
        %p447 = scmp.lt.s32.totalorder %s30, 1
        %s448 = scalar_select %p447, %s30, 1
        %s449 = smul.addr %s448, 8
        %s450 = smul.addr %s449, 4
        %s451 = scalar_lea.vmem %s3, %s450
        %p452 = pneg %p139
        %p453 = pneg %p136
        %p454 = pneg %p160
        %p455 = pneg %p157
        %p456 = pneg %p181
        %p457 = pneg %p178
        %p458 = pneg %p202
        %p459 = pneg %p199
        %p460 = pneg %p223
        %p461 = pneg %p220
        %p462 = pneg %p244
        %p463 = pneg %p241
        %p464 = pneg %p265
        %p465 = pneg %p262
        %p466 = pneg %p286
        %p467 = pneg %p283
        %p468 = pneg %p307
        %p469 = pneg %p304
        %p470 = pneg %p335
        %p471 = pneg %p332
        %s472 = sand.u32 %s322, 1
        %s473 = scalar_lea.sflag [#allocation6], %s472
        %s474 = sand.u32 %s322, 1
        %s475 = smul.addr %s474, 64
        %s476 = scalar_lea.vmem [#allocation5], %s475
        %s477 = smul.u32 8, %s31
        %p478 = scmp.lt.s32.totalorder %s30, 1
        %s479 = scalar_select %p478, %s30, 1
        %p480 = scmp.lt.s32.totalorder %s477, 7
        %s481 = scalar_select %p480, %s477, 7
        %s482 = smul.addr %s479, 8
        %s483 = sadd.s32 %s481, %s482
        %s484 = smul.addr %s483, 8
        %s485 = scalar_lea.vmem %s0, %s484
        %s486 = smul.u32 8, %s31
        %p487 = scmp.lt.s32.totalorder %s30, 1
        %s488 = scalar_select %p487, %s30, 1
        %s489 = smul.addr %s488, 8
        %s490 = smul.addr %s489, 4
        %s491 = scalar_lea.vmem %s1, %s490
        %p492 = scmp.lt.s32.totalorder %s30, 1
        %s493 = scalar_select %p492, %s30, 1
        %s494 = smul.addr %s493, 8
        %s495 = smul.addr %s494, 4
        %s496 = scalar_lea.vmem %s2, %s495
        %p497 = scmp.lt.s32.totalorder %s30, 1
        %s498 = scalar_select %p497, %s30, 1
        %s499 = smul.addr %s498, 8
        %s500 = smul.addr %s499, 4
        %s501 = scalar_lea.vmem %s3, %s500
        %s502 = smul.u32 8, %s31
        %p504 = scmp.eq.s32.totalorder %s31, 0
        // Predicated region
        $region69: #{tpu_custom_call.1} parent=67 // pred_check
          %p505 = pneg %p504
        $region70: #{tpu_custom_call.1} parent=67 // pred_check_branch
          %507 = sbr.rel (%p505) target = $region72
        $region71: #{tpu_custom_call.1} parent=67 // pred_region
          %v508 = vld [vmem:[%s496] sm:$0xf]
          %v509 = vld [vmem:[%s496 + $0x4] sm:$0xf]
          %v510 = vld [vmem:[%s496 + $0x8] sm:$0xf]
          %v511 = vld [vmem:[%s496 + $0xc] sm:$0xf]
          %v512 = vld [vmem:[%s496 + $0x10] sm:$0xf]
          %v513 = vld [vmem:[%s496 + $0x14] sm:$0xf]
          %v514 = vld [vmem:[%s496 + $0x18] sm:$0xf]
          %v515 = vld [vmem:[%s496 + $0x1c] sm:$0xf]
          %v516 = vld [vmem:[%s4] sm:$0xf]
          %v517 = vld [vmem:[%s4 + $0x4] sm:$0xf]
          %v518 = vld [vmem:[%s4 + $0x8] sm:$0xf]
          %v519 = vld [vmem:[%s4 + $0xc] sm:$0xf]
          %v520 = vld [vmem:[%s5] sm:$0x1]
          %v522 = vperm.slane %v520, 0
          %v532 = vunpack.c.l.b16 %v508
          %v533 = vunpack.c.l.b16 %v509
          %v534 = vunpack.c.l.b16 %v510
          %v535 = vunpack.c.l.b16 %v511
          %v536 = vunpack.c.l.b16 %v512
          %v537 = vunpack.c.l.b16 %v513
          %v538 = vunpack.c.l.b16 %v514
          %v539 = vunpack.c.l.b16 %v515
          %v540 = vpack.c.b16 %v533, %v532
          %v541 = vpack.c.b16 %v535, %v534
          %v542 = vpack.c.b16 %v537, %v536
          %v543 = vpack.c.b16 %v539, %v538
          %v548 = vunpack.c.l.b16 %v516
          %v549 = vunpack.c.l.b16 %v517
          %v550 = vunpack.c.l.b16 %v518
          %v551 = vunpack.c.l.b16 %v519
          %v552 = vpack.c.b16 %v549, %v548
          %v553 = vpack.c.b16 %v551, %v550
          %vm556 = vcmask 261120
          %v558 = vsel %vm556, %v540, 0
          %v561 = vsel %vm556, %v541, 0
          %v564 = vsel %vm556, %v542, 0
          %v567 = vsel %vm556, %v543, 0
          %569 = vmatpush.bf16.msra.mxu0 0
          %570 = vmatpush.bf16.msra.mxu0 0
          %571 = vmatpush.bf16.msra.mxu0 0
          %572 = vmatpush.bf16.msra.mxu0 0
          %573 = vmatpush.bf16.msra.mxu0 0
          %574 = vmatpush.bf16.msra.mxu0 0
          %575 = vmatpush.bf16.msra.mxu0 %v553
          %576 = vmatpush.bf16.msra.mxu0 %v552
          %577 = vmatmul.bf16.gmra.mxu0 %v558
          %v578 = vpop.f32.mrf.mxu0
          %v579 = vadd.f32 %v522, %v578
          %v580 = vpop.f32.mrf.mxu0
          %v581 = vadd.f32 %v522, %v580
          %582 = vmatmul.bf16.gmra.mxu0 %v561
          %v583 = vpop.f32.mrf.mxu0
          %v584 = vadd.f32 %v522, %v583
          %v585 = vpop.f32.mrf.mxu0
          %v586 = vadd.f32 %v522, %v585
          %587 = vmatmul.bf16.gmra.mxu0 %v564
          %v588 = vpop.f32.mrf.mxu0
          %v589 = vadd.f32 %v522, %v588
          %v590 = vpop.f32.mrf.mxu0
          %v591 = vadd.f32 %v522, %v590
          %592 = vmatmul.bf16.gmra.mxu0 %v567
          %v593 = vpop.f32.mrf.mxu0
          %v594 = vadd.f32 %v522, %v593
          %v595 = vpop.f32.mrf.mxu0
          %v596 = vadd.f32 %v522, %v595
          %597 = vdwg.mxu0
          %v598 = vld [vmem:[%s501] sm:$0xf]
          %v599 = vld [vmem:[%s501 + $0x4] sm:$0xf]
          %v600 = vld [vmem:[%s501 + $0x8] sm:$0xf]
          %v601 = vld [vmem:[%s501 + $0xc] sm:$0xf]
          %v602 = vld [vmem:[%s501 + $0x10] sm:$0xf]
          %v603 = vld [vmem:[%s501 + $0x14] sm:$0xf]
          %v604 = vld [vmem:[%s501 + $0x18] sm:$0xf]
          %v605 = vld [vmem:[%s501 + $0x1c] sm:$0xf]
          %v606 = vld [vmem:[%s6] sm:$0xf]
          %v607 = vld [vmem:[%s6 + $0x4] sm:$0xf]
          %v608 = vld [vmem:[%s7] sm:$0x1]
          %v610 = vperm.slane %v608, 0
          %v620 = vunpack.c.l.b16 %v598
          %v621 = vunpack.c.l.b16 %v599
          %v622 = vunpack.c.l.b16 %v600
          %v623 = vunpack.c.l.b16 %v601
          %v624 = vunpack.c.l.b16 %v602
          %v625 = vunpack.c.l.b16 %v603
          %v626 = vunpack.c.l.b16 %v604
          %v627 = vunpack.c.l.b16 %v605
          %v628 = vpack.c.b16 %v621, %v620
          %v629 = vpack.c.b16 %v623, %v622
          %v630 = vpack.c.b16 %v625, %v624
          %v631 = vpack.c.b16 %v627, %v626
          %v634 = vunpack.c.l.b16 %v606
          %v635 = vunpack.c.l.b16 %v607
          %v636 = vpack.c.b16 %v635, %v634
          %vm638 = vcmask 130048
          %v640 = vsel %vm638, %v628, 0
          %v643 = vsel %vm638, %v629, 0
          %v646 = vsel %vm638, %v630, 0
          %v649 = vsel %vm638, %v631, 0
          %651 = vmatpush.bf16.msra.mxu0 0
          %652 = vmatpush.bf16.msra.mxu0 0
          %653 = vmatpush.bf16.msra.mxu0 0
          %654 = vmatpush.bf16.msra.mxu0 0
          %655 = vmatpush.bf16.msra.mxu0 0
          %656 = vmatpush.bf16.msra.mxu0 0
          %657 = vmatpush.bf16.msra.mxu0 0
          %658 = vmatpush.bf16.msra.mxu0 %v636
          %659 = vmatmul.bf16.gmra.mxu0 %v640
          %v660 = vpop.f32.mrf.mxu0
          %v661 = vadd.f32 %v610, %v660
          %v662 = vpop.f32.mrf.mxu0
          %v663 = vadd.f32 %v610, %v662
          %664 = vmatmul.bf16.gmra.mxu0 %v643
          %v665 = vpop.f32.mrf.mxu0
          %v666 = vadd.f32 %v610, %v665
          %v667 = vpop.f32.mrf.mxu0
          %v668 = vadd.f32 %v610, %v667
          %669 = vmatmul.bf16.gmra.mxu0 %v646
          %v670 = vpop.f32.mrf.mxu0
          %v671 = vadd.f32 %v610, %v670
          %v672 = vpop.f32.mrf.mxu0
          %v673 = vadd.f32 %v610, %v672
          %674 = vmatmul.bf16.gmra.mxu0 %v649
          %v675 = vpop.f32.mrf.mxu0
          %v676 = vadd.f32 %v610, %v675
          %v677 = vpop.f32.mrf.mxu0
          %v678 = vadd.f32 %v610, %v677
          %679 = vdwg.mxu0
          %688 = vrot.lane.b32.xlu0 %v661, 2
          %v689 = vpop.permute.xlu0 %688
          %690 = vrot.lane.b32.xlu0 %v663, 2
          %v691 = vpop.permute.xlu0 %690
          %692 = vrot.lane.b32.xlu0 %v666, 2
          %v693 = vpop.permute.xlu0 %692
          %694 = vrot.lane.b32.xlu0 %v668, 2
          %v695 = vpop.permute.xlu0 %694
          %696 = vrot.lane.b32.xlu0 %v671, 2
          %v697 = vpop.permute.xlu0 %696
          %698 = vrot.lane.b32.xlu0 %v673, 2
          %v699 = vpop.permute.xlu0 %698
          %700 = vrot.lane.b32.xlu0 %v676, 2
          %v701 = vpop.permute.xlu0 %700
          %702 = vrot.lane.b32.xlu0 %v678, 2
          %v703 = vpop.permute.xlu0 %702
          %720 = vrot.lane.b32.xlu0 %v579, 2
          %v721 = vpop.permute.xlu0 %720
          %722 = vrot.lane.b32.xlu0 %v581, 2
          %v723 = vpop.permute.xlu0 %722
          %724 = vrot.lane.b32.xlu0 %v584, 2
          %v725 = vpop.permute.xlu0 %724
          %726 = vrot.lane.b32.xlu0 %v586, 2
          %v727 = vpop.permute.xlu0 %726
          %728 = vrot.lane.b32.xlu0 %v589, 2
          %v729 = vpop.permute.xlu0 %728
          %730 = vrot.lane.b32.xlu0 %v591, 2
          %v731 = vpop.permute.xlu0 %730
          %732 = vrot.lane.b32.xlu0 %v594, 2
          %v733 = vpop.permute.xlu0 %732
          %734 = vrot.lane.b32.xlu0 %v596, 2
          %v735 = vpop.permute.xlu0 %734
          %744 = vrot.lane.b32.xlu0 %v661, 4
          %v745 = vpop.permute.xlu0 %744
          %746 = vrot.lane.b32.xlu0 %v663, 4
          %v747 = vpop.permute.xlu0 %746
          %748 = vrot.lane.b32.xlu0 %v666, 4
          %v749 = vpop.permute.xlu0 %748
          %750 = vrot.lane.b32.xlu0 %v668, 4
          %v751 = vpop.permute.xlu0 %750
          %752 = vrot.lane.b32.xlu0 %v671, 4
          %v753 = vpop.permute.xlu0 %752
          %754 = vrot.lane.b32.xlu0 %v673, 4
          %v755 = vpop.permute.xlu0 %754
          %756 = vrot.lane.b32.xlu0 %v676, 4
          %v757 = vpop.permute.xlu0 %756
          %758 = vrot.lane.b32.xlu0 %v678, 4
          %v759 = vpop.permute.xlu0 %758
          %768 = vrot.lane.b32.xlu0 %v579, 4
          %v769 = vpop.permute.xlu0 %768
          %770 = vrot.lane.b32.xlu0 %v581, 4
          %v771 = vpop.permute.xlu0 %770
          %772 = vrot.lane.b32.xlu0 %v584, 4
          %v773 = vpop.permute.xlu0 %772
          %774 = vrot.lane.b32.xlu0 %v586, 4
          %v775 = vpop.permute.xlu0 %774
          %776 = vrot.lane.b32.xlu0 %v589, 4
          %v777 = vpop.permute.xlu0 %776
          %778 = vrot.lane.b32.xlu0 %v591, 4
          %v779 = vpop.permute.xlu0 %778
          %780 = vrot.lane.b32.xlu0 %v594, 4
          %v781 = vpop.permute.xlu0 %780
          %782 = vrot.lane.b32.xlu0 %v596, 4
          %v783 = vpop.permute.xlu0 %782
          %792 = vrot.lane.b32.xlu0 %v661, 6
          %v793 = vpop.permute.xlu0 %792
          %794 = vrot.lane.b32.xlu0 %v663, 6
          %v795 = vpop.permute.xlu0 %794
          %796 = vrot.lane.b32.xlu0 %v666, 6
          %v797 = vpop.permute.xlu0 %796
          %798 = vrot.lane.b32.xlu0 %v668, 6
          %v799 = vpop.permute.xlu0 %798
          %800 = vrot.lane.b32.xlu0 %v671, 6
          %v801 = vpop.permute.xlu0 %800
          %802 = vrot.lane.b32.xlu0 %v673, 6
          %v803 = vpop.permute.xlu0 %802
          %804 = vrot.lane.b32.xlu0 %v676, 6
          %v805 = vpop.permute.xlu0 %804
          %806 = vrot.lane.b32.xlu0 %v678, 6
          %v807 = vpop.permute.xlu0 %806
          %816 = vrot.lane.b32.xlu0 %v579, 6
          %v817 = vpop.permute.xlu0 %816
          %818 = vrot.lane.b32.xlu0 %v581, 6
          %v819 = vpop.permute.xlu0 %818
          %820 = vrot.lane.b32.xlu0 %v584, 6
          %v821 = vpop.permute.xlu0 %820
          %822 = vrot.lane.b32.xlu0 %v586, 6
          %v823 = vpop.permute.xlu0 %822
          %824 = vrot.lane.b32.xlu0 %v589, 6
          %v825 = vpop.permute.xlu0 %824
          %826 = vrot.lane.b32.xlu0 %v591, 6
          %v827 = vpop.permute.xlu0 %826
          %828 = vrot.lane.b32.xlu0 %v594, 6
          %v829 = vpop.permute.xlu0 %828
          %830 = vrot.lane.b32.xlu0 %v596, 6
          %v831 = vpop.permute.xlu0 %830
          %840 = vrot.lane.b32.xlu0 %v661, 8
          %v841 = vpop.permute.xlu0 %840
          %842 = vrot.lane.b32.xlu0 %v663, 8
          %v843 = vpop.permute.xlu0 %842
          %844 = vrot.lane.b32.xlu0 %v666, 8
          %v845 = vpop.permute.xlu0 %844
          %846 = vrot.lane.b32.xlu0 %v668, 8
          %v847 = vpop.permute.xlu0 %846
          %848 = vrot.lane.b32.xlu0 %v671, 8
          %v849 = vpop.permute.xlu0 %848
          %850 = vrot.lane.b32.xlu0 %v673, 8
          %v851 = vpop.permute.xlu0 %850
          %852 = vrot.lane.b32.xlu0 %v676, 8
          %v853 = vpop.permute.xlu0 %852
          %854 = vrot.lane.b32.xlu0 %v678, 8
          %v855 = vpop.permute.xlu0 %854
          %vm864 = vcmask 15360
          %v865 = vsel %vm864, %v579, %v689
          %v866 = vsel %vm864, %v581, %v691
          %v867 = vsel %vm864, %v584, %v693
          %v868 = vsel %vm864, %v586, %v695
          %v869 = vsel %vm864, %v589, %v697
          %v870 = vsel %vm864, %v591, %v699
          %v871 = vsel %vm864, %v594, %v701
          %v872 = vsel %vm864, %v596, %v703
          %vm873 = vcmask 31744
          %v874 = vsel %vm873, %v865, %v721
          %v875 = vsel %vm873, %v866, %v723
          %v876 = vsel %vm873, %v867, %v725
          %v877 = vsel %vm873, %v868, %v727
          %v878 = vsel %vm873, %v869, %v729
          %v879 = vsel %vm873, %v870, %v731
          %v880 = vsel %vm873, %v871, %v733
          %v881 = vsel %vm873, %v872, %v735
          %vm882 = vcmask 48128
          %v883 = vsel %vm882, %v874, %v745
          %v884 = vsel %vm882, %v875, %v747
          %v885 = vsel %vm882, %v876, %v749
          %v886 = vsel %vm882, %v877, %v751
          %v887 = vsel %vm882, %v878, %v753
          %v888 = vsel %vm882, %v879, %v755
          %v889 = vsel %vm882, %v880, %v757
          %v890 = vsel %vm882, %v881, %v759
          %vm891 = vcmask 64512
          %v892 = vsel %vm891, %v883, %v769
          %v893 = vsel %vm891, %v884, %v771
          %v894 = vsel %vm891, %v885, %v773
          %v895 = vsel %vm891, %v886, %v775
          %v896 = vsel %vm891, %v887, %v777
          %v897 = vsel %vm891, %v888, %v779
          %v898 = vsel %vm891, %v889, %v781
          %v899 = vsel %vm891, %v890, %v783
          %vm900 = vcmask 80896
          %v901 = vsel %vm900, %v892, %v793
          %v902 = vsel %vm900, %v893, %v795
          %v903 = vsel %vm900, %v894, %v797
          %v904 = vsel %vm900, %v895, %v799
          %v905 = vsel %vm900, %v896, %v801
          %v906 = vsel %vm900, %v897, %v803
          %v907 = vsel %vm900, %v898, %v805
          %v908 = vsel %vm900, %v899, %v807
          %vm909 = vcmask 97280
          %v910 = vsel %vm909, %v901, %v817
          %v911 = vsel %vm909, %v902, %v819
          %v912 = vsel %vm909, %v903, %v821
          %v913 = vsel %vm909, %v904, %v823
          %v914 = vsel %vm909, %v905, %v825
          %v915 = vsel %vm909, %v906, %v827
          %v916 = vsel %vm909, %v907, %v829
          %v917 = vsel %vm909, %v908, %v831
          %vm918 = vcmask 113664
          %v919 = vsel %vm918, %v910, %v841
          %v920 = vsel %vm918, %v911, %v843
          %v921 = vsel %vm918, %v912, %v845
          %v922 = vsel %vm918, %v913, %v847
          %v923 = vsel %vm918, %v914, %v849
          %v924 = vsel %vm918, %v915, %v851
          %v925 = vsel %vm918, %v916, %v853
          %v926 = vsel %vm918, %v917, %v855
          %v927 = vpack.c.bf16 %v919, %v919
          %v928 = vpack.c.bf16 %v920, %v920
          %v929 = vpack.c.bf16 %v921, %v921
          %v930 = vpack.c.bf16 %v922, %v922
          %v931 = vpack.c.bf16 %v923, %v923
          %v932 = vpack.c.bf16 %v924, %v924
          %v933 = vpack.c.bf16 %v925, %v925
          %v934 = vpack.c.bf16 %v926, %v926
          %vm935 = vcmask 125952
          %936 = vst.msk [vmem:[#allocation2] sm:$0xf] %vm935, %v927
          %937 = vst.msk [vmem:[#allocation2 + $0x4] sm:$0xf] %vm935, %v928
          %938 = vst.msk [vmem:[#allocation2 + $0x8] sm:$0xf] %vm935, %v929
          %939 = vst.msk [vmem:[#allocation2 + $0xc] sm:$0xf] %vm935, %v930
          %940 = vst.msk [vmem:[#allocation2 + $0x10] sm:$0xf] %vm935, %v931
          %941 = vst.msk [vmem:[#allocation2 + $0x14] sm:$0xf] %vm935, %v932
          %942 = vst.msk [vmem:[#allocation2 + $0x18] sm:$0xf] %vm935, %v933
          %943 = vst.msk [vmem:[#allocation2 + $0x1c] sm:$0xf] %vm935, %v934
          %v944 = vld [vmem:[%s491] sm:$0xf]
          %v945 = vld [vmem:[%s491 + $0x4] sm:$0xf]
          %v946 = vld [vmem:[%s491 + $0x8] sm:$0xf]
          %v947 = vld [vmem:[%s491 + $0xc] sm:$0xf]
          %v948 = vld [vmem:[%s491 + $0x10] sm:$0xf]
          %v949 = vld [vmem:[%s491 + $0x14] sm:$0xf]
          %v950 = vld [vmem:[%s491 + $0x18] sm:$0xf]
          %v951 = vld [vmem:[%s491 + $0x1c] sm:$0xf]
          %v952 = vld [vmem:[%s8] sm:$0xf]
          %v953 = vld [vmem:[%s8 + $0x4] sm:$0xf]
          %v954 = vld [vmem:[%s8 + $0x8] sm:$0xf]
          %v955 = vld [vmem:[%s8 + $0xc] sm:$0xf]
          %v956 = vld [vmem:[%s9] sm:$0x1]
          %v958 = vperm.slane %v956, 0
          %v968 = vunpack.c.l.b16 %v944
          %v969 = vunpack.c.l.b16 %v945
          %v970 = vunpack.c.l.b16 %v946
          %v971 = vunpack.c.l.b16 %v947
          %v972 = vunpack.c.l.b16 %v948
          %v973 = vunpack.c.l.b16 %v949
          %v974 = vunpack.c.l.b16 %v950
          %v975 = vunpack.c.l.b16 %v951
          %v976 = vpack.c.b16 %v969, %v968
          %v977 = vpack.c.b16 %v971, %v970
          %v978 = vpack.c.b16 %v973, %v972
          %v979 = vpack.c.b16 %v975, %v974
          %v984 = vunpack.c.l.b16 %v952
          %v985 = vunpack.c.l.b16 %v953
          %v986 = vunpack.c.l.b16 %v954
          %v987 = vunpack.c.l.b16 %v955
          %v988 = vpack.c.b16 %v985, %v984
          %v989 = vpack.c.b16 %v987, %v986
          %v993 = vsel %vm556, %v976, 0
          %v996 = vsel %vm556, %v977, 0
          %v999 = vsel %vm556, %v978, 0
          %v1002 = vsel %vm556, %v979, 0
          %1004 = vmatpush.bf16.msra.mxu0 0
          %1005 = vmatpush.bf16.msra.mxu0 0
          %1006 = vmatpush.bf16.msra.mxu0 0
          %1007 = vmatpush.bf16.msra.mxu0 0
          %1008 = vmatpush.bf16.msra.mxu0 0
          %1009 = vmatpush.bf16.msra.mxu0 0
          %1010 = vmatpush.bf16.msra.mxu0 %v989
          %1011 = vmatpush.bf16.msra.mxu0 %v988
          %1012 = vmatmul.bf16.gmra.mxu0 %v993
          %v1013 = vpop.f32.mrf.mxu0
          %v1014 = vadd.f32 %v958, %v1013
          %v1015 = vpop.f32.mrf.mxu0
          %v1016 = vadd.f32 %v958, %v1015
          %1017 = vmatmul.bf16.gmra.mxu0 %v996
          %v1018 = vpop.f32.mrf.mxu0
          %v1019 = vadd.f32 %v958, %v1018
          %v1020 = vpop.f32.mrf.mxu0
          %v1021 = vadd.f32 %v958, %v1020
          %1022 = vmatmul.bf16.gmra.mxu0 %v999
          %v1023 = vpop.f32.mrf.mxu0
          %v1024 = vadd.f32 %v958, %v1023
          %v1025 = vpop.f32.mrf.mxu0
          %v1026 = vadd.f32 %v958, %v1025
          %1027 = vmatmul.bf16.gmra.mxu0 %v1002
          %v1028 = vpop.f32.mrf.mxu0
          %v1029 = vadd.f32 %v958, %v1028
          %v1030 = vpop.f32.mrf.mxu0
          %v1031 = vadd.f32 %v958, %v1030
          %1032 = vdwg.mxu0
          %v1033 = vpack.c.bf16 %v1014, %v1014
          %v1034 = vpack.c.bf16 %v1016, %v1016
          %v1035 = vpack.c.bf16 %v1019, %v1019
          %v1036 = vpack.c.bf16 %v1021, %v1021
          %v1037 = vpack.c.bf16 %v1024, %v1024
          %v1038 = vpack.c.bf16 %v1026, %v1026
          %v1039 = vpack.c.bf16 %v1029, %v1029
          %v1040 = vpack.c.bf16 %v1031, %v1031
          %vm1041 = vcmask 60416
          %1042 = vst.msk [vmem:[#allocation3] sm:$0xf] %vm1041, %v1033
          %1043 = vst.msk [vmem:[#allocation3 + $0x4] sm:$0xf] %vm1041, %v1034
          %1044 = vst.msk [vmem:[#allocation3 + $0x8] sm:$0xf] %vm1041, %v1035
          %1045 = vst.msk [vmem:[#allocation3 + $0xc] sm:$0xf] %vm1041, %v1036
          %1046 = vst.msk [vmem:[#allocation3 + $0x10] sm:$0xf] %vm1041, %v1037
          %1047 = vst.msk [vmem:[#allocation3 + $0x14] sm:$0xf] %vm1041, %v1038
          %1048 = vst.msk [vmem:[#allocation3 + $0x18] sm:$0xf] %vm1041, %v1039
          %1049 = vst.msk [vmem:[#allocation3 + $0x1c] sm:$0xf] %vm1041, %v1040
          %1058 = vrot.lane.b32.xlu0 %v1033, 120
          %v1059 = vpop.permute.xlu0 %1058
          %1060 = vrot.lane.b32.xlu0 %v1034, 120
          %v1061 = vpop.permute.xlu0 %1060
          %1062 = vrot.lane.b32.xlu0 %v1035, 120
          %v1063 = vpop.permute.xlu0 %1062
          %1064 = vrot.lane.b32.xlu0 %v1036, 120
          %v1065 = vpop.permute.xlu0 %1064
          %1066 = vrot.lane.b32.xlu0 %v1037, 120
          %v1067 = vpop.permute.xlu0 %1066
          %1068 = vrot.lane.b32.xlu0 %v1038, 120
          %v1069 = vpop.permute.xlu0 %1068
          %1070 = vrot.lane.b32.xlu0 %v1039, 120
          %v1071 = vpop.permute.xlu0 %1070
          %1072 = vrot.lane.b32.xlu0 %v1040, 120
          %v1073 = vpop.permute.xlu0 %1072
          %1082 = vst.msk [vmem:[#allocation4] sm:$0xf] %vm1041, %v1059
          %1083 = vst.msk [vmem:[#allocation4 + $0x4] sm:$0xf] %vm1041, %v1061
          %1084 = vst.msk [vmem:[#allocation4 + $0x8] sm:$0xf] %vm1041, %v1063
          %1085 = vst.msk [vmem:[#allocation4 + $0xc] sm:$0xf] %vm1041, %v1065
          %1086 = vst.msk [vmem:[#allocation4 + $0x10] sm:$0xf] %vm1041, %v1067
          %1087 = vst.msk [vmem:[#allocation4 + $0x14] sm:$0xf] %vm1041, %v1069
          %1088 = vst.msk [vmem:[#allocation4 + $0x18] sm:$0xf] %vm1041, %v1071
          %1089 = vst.msk [vmem:[#allocation4 + $0x1c] sm:$0xf] %vm1041, %v1073
        $region72: #{tpu_custom_call.1} parent=67 // pred_fallthru
          _
        %s1090 = smul.u32 %s31, 64
        %s1091 = sshra.s32 %s1090, 3
        %s1092 = sand.u32 %s1090, 7
        %s1093 = smul.addr %s1091, 4
        %s1094 = scalar_lea.vmem [#allocation2], %s1093
        %v1095 = vld [vmem:[%s1094] sm:$0xf]
        %v1096 = vld [vmem:[%s1094 + $0x4] sm:$0xf]
        %v1097 = vld [vmem:[%s1094 + $0x8] sm:$0xf]
        %v1098 = vld [vmem:[%s1094 + $0xc] sm:$0xf]
        %v1099 = vld [vmem:[%s1094 + $0x10] sm:$0xf]
        %v1100 = vld [vmem:[%s1094 + $0x14] sm:$0xf]
        %v1101 = vld [vmem:[%s1094 + $0x18] sm:$0xf]
        %v1102 = vld [vmem:[%s1094 + $0x1c] sm:$0xf]
        %v1103 = vld [vmem:[#allocation2] sm:$0xf]
        %v1104 = vld [vmem:[#allocation2 + $0x4] sm:$0xf]
        %v1105 = vld [vmem:[#allocation2 + $0x8] sm:$0xf]
        %v1106 = vld [vmem:[#allocation2 + $0xc] sm:$0xf]
        %v1107 = vld [vmem:[#allocation2 + $0x10] sm:$0xf]
        %v1108 = vld [vmem:[#allocation2 + $0x14] sm:$0xf]
        %v1109 = vld [vmem:[#allocation2 + $0x18] sm:$0xf]
        %v1110 = vld [vmem:[#allocation2 + $0x1c] sm:$0xf]
        %v1119 = vunpack.c.l.b16 %v1095
        %v1120 = vunpack.c.l.b16 %v1096
        %v1121 = vunpack.c.l.b16 %v1097
        %v1122 = vunpack.c.l.b16 %v1098
        %v1123 = vunpack.c.l.b16 %v1099
        %v1124 = vunpack.c.l.b16 %v1100
        %v1125 = vunpack.c.l.b16 %v1101
        %v1126 = vunpack.c.l.b16 %v1102
        %v1127 = vpack.c.b16 %v1120, %v1119
        %v1128 = vpack.c.b16 %v1122, %v1121
        %v1129 = vpack.c.b16 %v1124, %v1123
        %v1130 = vpack.c.b16 %v1126, %v1125
        %1131 = vrot.lane.b32.xlu0 %v1127, 124
        %v1132 = vpop.permute.xlu0 %1131
        %1133 = vrot.lane.b32.xlu0 %v1128, 124
        %v1134 = vpop.permute.xlu0 %1133
        %1135 = vrot.lane.b32.xlu0 %v1129, 124
        %v1136 = vpop.permute.xlu0 %1135
        %1137 = vrot.lane.b32.xlu0 %v1130, 124
        %v1138 = vpop.permute.xlu0 %1137
        %v1147 = vunpack.c.l.b16 %v1103
        %v1148 = vunpack.c.l.b16 %v1104
        %v1149 = vunpack.c.l.b16 %v1105
        %v1150 = vunpack.c.l.b16 %v1106
        %v1151 = vunpack.c.l.b16 %v1107
        %v1152 = vunpack.c.l.b16 %v1108
        %v1153 = vunpack.c.l.b16 %v1109
        %v1154 = vunpack.c.l.b16 %v1110
        %v1155 = vpack.c.b16 %v1148, %v1147
        %v1156 = vpack.c.b16 %v1150, %v1149
        %v1157 = vpack.c.b16 %v1152, %v1151
        %v1158 = vpack.c.b16 %v1154, %v1153
        %vm1159 = vcmask 31744
        %v1161 = vsel %vm1159, %v1132, 0
        %v1164 = vsel %vm1159, %v1134, 0
        %v1167 = vsel %vm1159, %v1136, 0
        %v1170 = vsel %vm1159, %v1138, 0
        %v1173 = vsel %vm1159, %v1155, 0
        %v1176 = vsel %vm1159, %v1156, 0
        %v1179 = vsel %vm1159, %v1157, 0
        %v1182 = vsel %vm1159, %v1158, 0
        %1184 = vmatpush.bf16.xpose.msra.mxu0 0
        %1185 = vmatpush.bf16.xpose.msra.mxu0 0
        %1186 = vmatpush.bf16.xpose.msra.mxu0 0
        %1187 = vmatpush.bf16.xpose.msra.mxu0 0
        %1188 = vmatpush.bf16.xpose.msra.mxu0 %v1182
        %1189 = vmatpush.bf16.xpose.msra.mxu0 %v1179
        %1190 = vmatpush.bf16.xpose.msra.mxu0 %v1176
        %1191 = vmatpush.bf16.xpose.msra.mxu0 %v1173
        %1192 = vmatmul.bf16.gmra.mxu0 %v1161
        %v1193 = vpop.f32.mrf.mxu0
        %v1194 = vadd.f32 0.0, %v1193
        %v1195 = vpop.f32.mrf.mxu0
        %v1196 = vadd.f32 0.0, %v1195
        %1197 = vmatmul.bf16.gmra.mxu0 %v1164
        %v1198 = vpop.f32.mrf.mxu0
        %v1199 = vadd.f32 0.0, %v1198
        %v1200 = vpop.f32.mrf.mxu0
        %v1201 = vadd.f32 0.0, %v1200
        %1202 = vmatmul.bf16.gmra.mxu0 %v1167
        %v1203 = vpop.f32.mrf.mxu0
        %v1204 = vadd.f32 0.0, %v1203
        %v1205 = vpop.f32.mrf.mxu0
        %v1206 = vadd.f32 0.0, %v1205
        %1207 = vmatmul.bf16.gmra.mxu0 %v1170
        %v1208 = vpop.f32.mrf.mxu0
        %v1209 = vadd.f32 0.0, %v1208
        %v1210 = vpop.f32.mrf.mxu0
        %v1211 = vadd.f32 0.0, %v1210
        %1212 = vdwg.mxu0
        %vm1213 = vcmask 523264
        %v1214 = vsel %vm1213, %v1194, -inf
        %1215 = vmax.xlane.f32.xlu0 %v1214
        %v1216 = vpop.xlane.xlu0 %1215
        %v1217 = vsel %vm1213, %v1196, -inf
        %1218 = vmax.xlane.f32.xlu0 %v1217
        %v1219 = vpop.xlane.xlu0 %1218
        %v1220 = vsel %vm1213, %v1199, -inf
        %1221 = vmax.xlane.f32.xlu0 %v1220
        %v1222 = vpop.xlane.xlu0 %1221
        %v1223 = vsel %vm1213, %v1201, -inf
        %1224 = vmax.xlane.f32.xlu0 %v1223
        %v1225 = vpop.xlane.xlu0 %1224
        %v1226 = vsel %vm1213, %v1204, -inf
        %1227 = vmax.xlane.f32.xlu0 %v1226
        %v1228 = vpop.xlane.xlu0 %1227
        %v1229 = vsel %vm1213, %v1206, -inf
        %1230 = vmax.xlane.f32.xlu0 %v1229
        %v1231 = vpop.xlane.xlu0 %1230
        %v1232 = vsel %vm1213, %v1209, -inf
        %1233 = vmax.xlane.f32.xlu0 %v1232
        %v1234 = vpop.xlane.xlu0 %1233
        %v1235 = vsel %vm1213, %v1211, -inf
        %1236 = vmax.xlane.f32.xlu0 %v1235
        %v1237 = vpop.xlane.xlu0 %1236
        %v1238 = vsub.f32 %v1194, %v1216
        %v1239 = vsub.f32 %v1196, %v1219
        %v1240 = vsub.f32 %v1199, %v1222
        %v1241 = vsub.f32 %v1201, %v1225
        %v1242 = vsub.f32 %v1204, %v1228
        %v1243 = vsub.f32 %v1206, %v1231
        %v1244 = vsub.f32 %v1209, %v1234
        %v1245 = vsub.f32 %v1211, %v1237
        %v1246 = vmul.f32 %v1238, 1.442695
        %v1247 = vpow.pop %v1246
        %v1248 = vmul.f32 %v1239, 1.442695
        %v1249 = vpow.pop %v1248
        %v1250 = vmul.f32 %v1240, 1.442695
        %v1251 = vpow.pop %v1250
        %v1252 = vmul.f32 %v1241, 1.442695
        %v1253 = vpow.pop %v1252
        %v1254 = vmul.f32 %v1242, 1.442695
        %v1255 = vpow.pop %v1254
        %v1256 = vmul.f32 %v1243, 1.442695
        %v1257 = vpow.pop %v1256
        %v1258 = vmul.f32 %v1244, 1.442695
        %v1259 = vpow.pop %v1258
        %v1260 = vmul.f32 %v1245, 1.442695
        %v1261 = vpow.pop %v1260
        %v1262 = vpack.c.bf16 %v1249, %v1247
        %v1263 = vpack.c.bf16 %v1253, %v1251
        %v1264 = vpack.c.bf16 %v1257, %v1255
        %v1265 = vpack.c.bf16 %v1261, %v1259
        %v1266 = vld [vmem:[#allocation3] sm:$0xf]
        %v1267 = vld [vmem:[#allocation3 + $0x4] sm:$0xf]
        %v1268 = vld [vmem:[#allocation3 + $0x8] sm:$0xf]
        %v1269 = vld [vmem:[#allocation3 + $0xc] sm:$0xf]
        %v1270 = vld [vmem:[#allocation3 + $0x10] sm:$0xf]
        %v1271 = vld [vmem:[#allocation3 + $0x14] sm:$0xf]
        %v1272 = vld [vmem:[#allocation3 + $0x18] sm:$0xf]
        %v1273 = vld [vmem:[#allocation3 + $0x1c] sm:$0xf]
        %v1282 = vunpack.c.l.b16 %v1266
        %v1283 = vunpack.c.l.b16 %v1267
        %v1284 = vunpack.c.l.b16 %v1268
        %v1285 = vunpack.c.l.b16 %v1269
        %v1286 = vunpack.c.l.b16 %v1270
        %v1287 = vunpack.c.l.b16 %v1271
        %v1288 = vunpack.c.l.b16 %v1272
        %v1289 = vunpack.c.l.b16 %v1273
        %v1290 = vpack.c.b16 %v1283, %v1282
        %v1291 = vpack.c.b16 %v1285, %v1284
        %v1292 = vpack.c.b16 %v1287, %v1286
        %v1293 = vpack.c.b16 %v1289, %v1288
        %v1299 = vsel %vm1213, %v1262, 0
        %v1302 = vsel %vm1213, %v1263, 0
        %v1305 = vsel %vm1213, %v1264, 0
        %v1308 = vsel %vm1213, %v1265, 0
        %1310 = vmatpush.bf16.msra.mxu0 0
        %1311 = vmatpush.bf16.msra.mxu0 0
        %1312 = vmatpush.bf16.msra.mxu0 0
        %1313 = vmatpush.bf16.msra.mxu0 0
        %1314 = vmatpush.bf16.msra.mxu0 %v1293
        %1315 = vmatpush.bf16.msra.mxu0 %v1292
        %1316 = vmatpush.bf16.msra.mxu0 %v1291
        %1317 = vmatpush.bf16.msra.mxu0 %v1290
        %1318 = vmatmul.bf16.gmra.mxu0 %v1299
        %v1319 = vpop.f32.mrf.mxu0
        %v1320 = vadd.f32 0.0, %v1319
        %v1321 = vpop.f32.mrf.mxu0
        %v1322 = vadd.f32 0.0, %v1321
        %1323 = vmatmul.bf16.gmra.mxu0 %v1302
        %v1324 = vpop.f32.mrf.mxu0
        %v1325 = vadd.f32 0.0, %v1324
        %v1326 = vpop.f32.mrf.mxu0
        %v1327 = vadd.f32 0.0, %v1326
        %1328 = vmatmul.bf16.gmra.mxu0 %v1305
        %v1329 = vpop.f32.mrf.mxu0
        %v1330 = vadd.f32 0.0, %v1329
        %v1331 = vpop.f32.mrf.mxu0
        %v1332 = vadd.f32 0.0, %v1331
        %1333 = vmatmul.bf16.gmra.mxu0 %v1308
        %v1334 = vpop.f32.mrf.mxu0
        %v1335 = vadd.f32 0.0, %v1334
        %v1336 = vpop.f32.mrf.mxu0
        %v1337 = vadd.f32 0.0, %v1336
        %1338 = vdwg.mxu0
        %v1339 = vsel %vm1213, %v1247, 0.0
        %1340 = vadd.xlane.f32.xlu0 %v1339
        %v1341 = vpop.xlane.xlu0 %1340
        %v1342 = vsel %vm1213, %v1249, 0.0
        %1343 = vadd.xlane.f32.xlu0 %v1342
        %v1344 = vpop.xlane.xlu0 %1343
        %v1345 = vsel %vm1213, %v1251, 0.0
        %1346 = vadd.xlane.f32.xlu0 %v1345
        %v1347 = vpop.xlane.xlu0 %1346
        %v1348 = vsel %vm1213, %v1253, 0.0
        %1349 = vadd.xlane.f32.xlu0 %v1348
        %v1350 = vpop.xlane.xlu0 %1349
        %v1351 = vsel %vm1213, %v1255, 0.0
        %1352 = vadd.xlane.f32.xlu0 %v1351
        %v1353 = vpop.xlane.xlu0 %1352
        %v1354 = vsel %vm1213, %v1257, 0.0
        %1355 = vadd.xlane.f32.xlu0 %v1354
        %v1356 = vpop.xlane.xlu0 %1355
        %v1357 = vsel %vm1213, %v1259, 0.0
        %1358 = vadd.xlane.f32.xlu0 %v1357
        %v1359 = vpop.xlane.xlu0 %1358
        %v1360 = vsel %vm1213, %v1261, 0.0
        %1361 = vadd.xlane.f32.xlu0 %v1360
        %v1362 = vpop.xlane.xlu0 %1361
        %v1363 = vrcp.pop %v1341
        %v1364 = vrcp.pop %v1344
        %v1365 = vrcp.pop %v1347
        %v1366 = vrcp.pop %v1350
        %v1367 = vrcp.pop %v1353
        %v1368 = vrcp.pop %v1356
        %v1369 = vrcp.pop %v1359
        %v1370 = vrcp.pop %v1362
        %v1371 = vmul.f32 %v1320, %v1363
        %v1372 = vmul.f32 %v1322, %v1364
        %v1373 = vmul.f32 %v1325, %v1365
        %v1374 = vmul.f32 %v1327, %v1366
        %v1375 = vmul.f32 %v1330, %v1367
        %v1376 = vmul.f32 %v1332, %v1368
        %v1377 = vmul.f32 %v1335, %v1369
        %v1378 = vmul.f32 %v1337, %v1370
        %1379 = vrot.lane.b32.xlu0 %v1127, 116
        %v1380 = vpop.permute.xlu0 %1379
        %1381 = vrot.lane.b32.xlu0 %v1128, 116
        %v1382 = vpop.permute.xlu0 %1381
        %1383 = vrot.lane.b32.xlu0 %v1129, 116
        %v1384 = vpop.permute.xlu0 %1383
        %1385 = vrot.lane.b32.xlu0 %v1130, 116
        %v1386 = vpop.permute.xlu0 %1385
        %1387 = vrot.lane.b32.xlu0 %v1155, 120
        %v1388 = vpop.permute.xlu0 %1387
        %1389 = vrot.lane.b32.xlu0 %v1156, 120
        %v1390 = vpop.permute.xlu0 %1389
        %1391 = vrot.lane.b32.xlu0 %v1157, 120
        %v1392 = vpop.permute.xlu0 %1391
        %1393 = vrot.lane.b32.xlu0 %v1158, 120
        %v1394 = vpop.permute.xlu0 %1393
        %v1396 = vsel %vm1159, %v1380, 0
        %v1399 = vsel %vm1159, %v1382, 0
        %v1402 = vsel %vm1159, %v1384, 0
        %v1405 = vsel %vm1159, %v1386, 0
        %v1408 = vsel %vm1159, %v1388, 0
        %v1411 = vsel %vm1159, %v1390, 0
        %v1414 = vsel %vm1159, %v1392, 0
        %v1417 = vsel %vm1159, %v1394, 0
        %1419 = vmatpush.bf16.xpose.msra.mxu0 0
        %1420 = vmatpush.bf16.xpose.msra.mxu0 0
        %1421 = vmatpush.bf16.xpose.msra.mxu0 0
        %1422 = vmatpush.bf16.xpose.msra.mxu0 0
        %1423 = vmatpush.bf16.xpose.msra.mxu0 %v1417
        %1424 = vmatpush.bf16.xpose.msra.mxu0 %v1414
        %1425 = vmatpush.bf16.xpose.msra.mxu0 %v1411
        %1426 = vmatpush.bf16.xpose.msra.mxu0 %v1408
        %1427 = vmatmul.bf16.gmra.mxu0 %v1396
        %v1428 = vpop.f32.mrf.mxu0
        %v1429 = vadd.f32 0.0, %v1428
        %v1430 = vpop.f32.mrf.mxu0
        %v1431 = vadd.f32 0.0, %v1430
        %1432 = vmatmul.bf16.gmra.mxu0 %v1399
        %v1433 = vpop.f32.mrf.mxu0
        %v1434 = vadd.f32 0.0, %v1433
        %v1435 = vpop.f32.mrf.mxu0
        %v1436 = vadd.f32 0.0, %v1435
        %1437 = vmatmul.bf16.gmra.mxu0 %v1402
        %v1438 = vpop.f32.mrf.mxu0
        %v1439 = vadd.f32 0.0, %v1438
        %v1440 = vpop.f32.mrf.mxu0
        %v1441 = vadd.f32 0.0, %v1440
        %1442 = vmatmul.bf16.gmra.mxu0 %v1405
        %v1443 = vpop.f32.mrf.mxu0
        %v1444 = vadd.f32 0.0, %v1443
        %v1445 = vpop.f32.mrf.mxu0
        %v1446 = vadd.f32 0.0, %v1445
        %1447 = vdwg.mxu0
        %v1448 = vsel %vm1213, %v1429, -inf
        %1449 = vmax.xlane.f32.xlu0 %v1448
        %v1450 = vpop.xlane.xlu0 %1449
        %v1451 = vsel %vm1213, %v1431, -inf
        %1452 = vmax.xlane.f32.xlu0 %v1451
        %v1453 = vpop.xlane.xlu0 %1452
        %v1454 = vsel %vm1213, %v1434, -inf
        %1455 = vmax.xlane.f32.xlu0 %v1454
        %v1456 = vpop.xlane.xlu0 %1455
        %v1457 = vsel %vm1213, %v1436, -inf
        %1458 = vmax.xlane.f32.xlu0 %v1457
        %v1459 = vpop.xlane.xlu0 %1458
        %v1460 = vsel %vm1213, %v1439, -inf
        %1461 = vmax.xlane.f32.xlu0 %v1460
        %v1462 = vpop.xlane.xlu0 %1461
        %v1463 = vsel %vm1213, %v1441, -inf
        %1464 = vmax.xlane.f32.xlu0 %v1463
        %v1465 = vpop.xlane.xlu0 %1464
        %v1466 = vsel %vm1213, %v1444, -inf
        %1467 = vmax.xlane.f32.xlu0 %v1466
        %v1468 = vpop.xlane.xlu0 %1467
        %v1469 = vsel %vm1213, %v1446, -inf
        %1470 = vmax.xlane.f32.xlu0 %v1469
        %v1471 = vpop.xlane.xlu0 %1470
        %v1472 = vsub.f32 %v1429, %v1450
        %v1473 = vsub.f32 %v1431, %v1453
        %v1474 = vsub.f32 %v1434, %v1456
        %v1475 = vsub.f32 %v1436, %v1459
        %v1476 = vsub.f32 %v1439, %v1462
        %v1477 = vsub.f32 %v1441, %v1465
        %v1478 = vsub.f32 %v1444, %v1468
        %v1479 = vsub.f32 %v1446, %v1471
        %v1480 = vmul.f32 %v1472, 1.442695
        %v1481 = vpow.pop %v1480
        %v1482 = vmul.f32 %v1473, 1.442695
        %v1483 = vpow.pop %v1482
        %v1484 = vmul.f32 %v1474, 1.442695
        %v1485 = vpow.pop %v1484
        %v1486 = vmul.f32 %v1475, 1.442695
        %v1487 = vpow.pop %v1486
        %v1488 = vmul.f32 %v1476, 1.442695
        %v1489 = vpow.pop %v1488
        %v1490 = vmul.f32 %v1477, 1.442695
        %v1491 = vpow.pop %v1490
        %v1492 = vmul.f32 %v1478, 1.442695
        %v1493 = vpow.pop %v1492
        %v1494 = vmul.f32 %v1479, 1.442695
        %v1495 = vpow.pop %v1494
        %v1496 = vpack.c.bf16 %v1483, %v1481
        %v1497 = vpack.c.bf16 %v1487, %v1485
        %v1498 = vpack.c.bf16 %v1491, %v1489
        %v1499 = vpack.c.bf16 %v1495, %v1493
        %v1500 = vld [vmem:[#allocation4] sm:$0xf]
        %v1501 = vld [vmem:[#allocation4 + $0x4] sm:$0xf]
        %v1502 = vld [vmem:[#allocation4 + $0x8] sm:$0xf]
        %v1503 = vld [vmem:[#allocation4 + $0xc] sm:$0xf]
        %v1504 = vld [vmem:[#allocation4 + $0x10] sm:$0xf]
        %v1505 = vld [vmem:[#allocation4 + $0x14] sm:$0xf]
        %v1506 = vld [vmem:[#allocation4 + $0x18] sm:$0xf]
        %v1507 = vld [vmem:[#allocation4 + $0x1c] sm:$0xf]
        %v1516 = vunpack.c.l.b16 %v1500
        %v1517 = vunpack.c.l.b16 %v1501
        %v1518 = vunpack.c.l.b16 %v1502
        %v1519 = vunpack.c.l.b16 %v1503
        %v1520 = vunpack.c.l.b16 %v1504
        %v1521 = vunpack.c.l.b16 %v1505
        %v1522 = vunpack.c.l.b16 %v1506
        %v1523 = vunpack.c.l.b16 %v1507
        %v1524 = vpack.c.b16 %v1517, %v1516
        %v1525 = vpack.c.b16 %v1519, %v1518
        %v1526 = vpack.c.b16 %v1521, %v1520
        %v1527 = vpack.c.b16 %v1523, %v1522
        %v1533 = vsel %vm1213, %v1496, 0
        %v1536 = vsel %vm1213, %v1497, 0
        %v1539 = vsel %vm1213, %v1498, 0
        %v1542 = vsel %vm1213, %v1499, 0
        %1544 = vmatpush.bf16.msra.mxu0 0
        %1545 = vmatpush.bf16.msra.mxu0 0
        %1546 = vmatpush.bf16.msra.mxu0 0
        %1547 = vmatpush.bf16.msra.mxu0 0
        %1548 = vmatpush.bf16.msra.mxu0 %v1527
        %1549 = vmatpush.bf16.msra.mxu0 %v1526
        %1550 = vmatpush.bf16.msra.mxu0 %v1525
        %1551 = vmatpush.bf16.msra.mxu0 %v1524
        %1552 = vmatmul.bf16.gmra.mxu0 %v1533
        %v1553 = vpop.f32.mrf.mxu0
        %v1554 = vadd.f32 0.0, %v1553
        %v1555 = vpop.f32.mrf.mxu0
        %v1556 = vadd.f32 0.0, %v1555
        %1557 = vmatmul.bf16.gmra.mxu0 %v1536
        %v1558 = vpop.f32.mrf.mxu0
        %v1559 = vadd.f32 0.0, %v1558
        %v1560 = vpop.f32.mrf.mxu0
        %v1561 = vadd.f32 0.0, %v1560
        %1562 = vmatmul.bf16.gmra.mxu0 %v1539
        %v1563 = vpop.f32.mrf.mxu0
        %v1564 = vadd.f32 0.0, %v1563
        %v1565 = vpop.f32.mrf.mxu0
        %v1566 = vadd.f32 0.0, %v1565
        %1567 = vmatmul.bf16.gmra.mxu0 %v1542
        %v1568 = vpop.f32.mrf.mxu0
        %v1569 = vadd.f32 0.0, %v1568
        %v1570 = vpop.f32.mrf.mxu0
        %v1571 = vadd.f32 0.0, %v1570
        %1572 = vdwg.mxu0
        %v1573 = vsel %vm1213, %v1481, 0.0
        %1574 = vadd.xlane.f32.xlu0 %v1573
        %v1575 = vpop.xlane.xlu0 %1574
        %v1576 = vsel %vm1213, %v1483, 0.0
        %1577 = vadd.xlane.f32.xlu0 %v1576
        %v1578 = vpop.xlane.xlu0 %1577
        %v1579 = vsel %vm1213, %v1485, 0.0
        %1580 = vadd.xlane.f32.xlu0 %v1579
        %v1581 = vpop.xlane.xlu0 %1580
        %v1582 = vsel %vm1213, %v1487, 0.0
        %1583 = vadd.xlane.f32.xlu0 %v1582
        %v1584 = vpop.xlane.xlu0 %1583
        %v1585 = vsel %vm1213, %v1489, 0.0
        %1586 = vadd.xlane.f32.xlu0 %v1585
        %v1587 = vpop.xlane.xlu0 %1586
        %v1588 = vsel %vm1213, %v1491, 0.0
        %1589 = vadd.xlane.f32.xlu0 %v1588
        %v1590 = vpop.xlane.xlu0 %1589
        %v1591 = vsel %vm1213, %v1493, 0.0
        %1592 = vadd.xlane.f32.xlu0 %v1591
        %v1593 = vpop.xlane.xlu0 %1592
        %v1594 = vsel %vm1213, %v1495, 0.0
        %1595 = vadd.xlane.f32.xlu0 %v1594
        %v1596 = vpop.xlane.xlu0 %1595
        %v1597 = vrcp.pop %v1575
        %v1598 = vrcp.pop %v1578
        %v1599 = vrcp.pop %v1581
        %v1600 = vrcp.pop %v1584
        %v1601 = vrcp.pop %v1587
        %v1602 = vrcp.pop %v1590
        %v1603 = vrcp.pop %v1593
        %v1604 = vrcp.pop %v1596
        %v1605 = vmul.f32 %v1554, %v1597
        %v1606 = vmul.f32 %v1556, %v1598
        %v1607 = vmul.f32 %v1559, %v1599
        %v1608 = vmul.f32 %v1561, %v1600
        %v1609 = vmul.f32 %v1564, %v1601
        %v1610 = vmul.f32 %v1566, %v1602
        %v1611 = vmul.f32 %v1569, %v1603
        %v1612 = vmul.f32 %v1571, %v1604
        %1621 = vrot.lane.b32.xlu0 %v1605, 8
        %v1622 = vpop.permute.xlu0 %1621
        %1623 = vrot.lane.b32.xlu0 %v1606, 8
        %v1624 = vpop.permute.xlu0 %1623
        %1625 = vrot.lane.b32.xlu0 %v1607, 8
        %v1626 = vpop.permute.xlu0 %1625
        %1627 = vrot.lane.b32.xlu0 %v1608, 8
        %v1628 = vpop.permute.xlu0 %1627
        %1629 = vrot.lane.b32.xlu0 %v1609, 8
        %v1630 = vpop.permute.xlu0 %1629
        %1631 = vrot.lane.b32.xlu0 %v1610, 8
        %v1632 = vpop.permute.xlu0 %1631
        %1633 = vrot.lane.b32.xlu0 %v1611, 8
        %v1634 = vpop.permute.xlu0 %1633
        %1635 = vrot.lane.b32.xlu0 %v1612, 8
        %v1636 = vpop.permute.xlu0 %1635
        %vm1645 = vcmask 64512
        %v1646 = vsel %vm1645, %v1371, %v1622
        %v1647 = vsel %vm1645, %v1372, %v1624
        %v1648 = vsel %vm1645, %v1373, %v1626
        %v1649 = vsel %vm1645, %v1374, %v1628
        %v1650 = vsel %vm1645, %v1375, %v1630
        %v1651 = vsel %vm1645, %v1376, %v1632
        %v1652 = vsel %vm1645, %v1377, %v1634
        %v1653 = vsel %vm1645, %v1378, %v1636
        %v1654 = vpack.c.bf16 %v1647, %v1646
        %v1655 = vpack.c.bf16 %v1649, %v1648
        %v1656 = vpack.c.bf16 %v1651, %v1650
        %v1657 = vpack.c.bf16 %v1653, %v1652
        %v1658 = vld [vmem:[%s10] sm:$0xf]
        %v1659 = vld [vmem:[%s10 + $0x4] sm:$0xf]
        %v1660 = vld [vmem:[%s11] sm:$0x1]
        %v1662 = vperm.slane %v1660, 0
        %v1666 = vunpack.c.l.b16 %v1658
        %v1667 = vunpack.c.l.b16 %v1659
        %v1668 = vpack.c.b16 %v1667, %v1666
        %vm1670 = vcmask 130048
        %v1672 = vsel %vm1670, %v1654, 0
        %v1675 = vsel %vm1670, %v1655, 0
        %v1678 = vsel %vm1670, %v1656, 0
        %v1681 = vsel %vm1670, %v1657, 0
        %1683 = vmatpush.bf16.msra.mxu0 0
        %1684 = vmatpush.bf16.msra.mxu0 0
        %1685 = vmatpush.bf16.msra.mxu0 0
        %1686 = vmatpush.bf16.msra.mxu0 0
        %1687 = vmatpush.bf16.msra.mxu0 0
        %1688 = vmatpush.bf16.msra.mxu0 0
        %1689 = vmatpush.bf16.msra.mxu0 0
        %1690 = vmatpush.bf16.msra.mxu0 %v1668
        %1691 = vmatmul.bf16.gmra.mxu0 %v1672
        %v1692 = vpop.f32.mrf.mxu0
        %v1693 = vadd.f32 %v1662, %v1692
        %v1694 = vpop.f32.mrf.mxu0
        %v1695 = vadd.f32 %v1662, %v1694
        %1696 = vmatmul.bf16.gmra.mxu0 %v1675
        %v1697 = vpop.f32.mrf.mxu0
        %v1698 = vadd.f32 %v1662, %v1697
        %v1699 = vpop.f32.mrf.mxu0
        %v1700 = vadd.f32 %v1662, %v1699
        %1701 = vmatmul.bf16.gmra.mxu0 %v1678
        %v1702 = vpop.f32.mrf.mxu0
        %v1703 = vadd.f32 %v1662, %v1702
        %v1704 = vpop.f32.mrf.mxu0
        %v1705 = vadd.f32 %v1662, %v1704
        %1706 = vmatmul.bf16.gmra.mxu0 %v1681
        %v1707 = vpop.f32.mrf.mxu0
        %v1708 = vadd.f32 %v1662, %v1707
        %v1709 = vpop.f32.mrf.mxu0
        %v1710 = vadd.f32 %v1662, %v1709
        %1711 = vdwg.mxu0
        %v1712 = vld [vmem:[%s485] sm:$0xff]
        %v1713 = vld [vmem:[%s485 + $0x8] sm:$0xff]
        %v1714 = vld [vmem:[%s485 + $0x10] sm:$0xff]
        %v1715 = vld [vmem:[%s485 + $0x18] sm:$0xff]
        %v1716 = vld [vmem:[%s485 + $0x20] sm:$0xff]
        %v1717 = vld [vmem:[%s485 + $0x28] sm:$0xff]
        %v1718 = vld [vmem:[%s485 + $0x30] sm:$0xff]
        %v1719 = vld [vmem:[%s485 + $0x38] sm:$0xff]
        %v1720 = vadd.f32 %v1693, %v1712
        %v1721 = vadd.f32 %v1695, %v1713
        %v1722 = vadd.f32 %v1698, %v1714
        %v1723 = vadd.f32 %v1700, %v1715
        %v1724 = vadd.f32 %v1703, %v1716
        %v1725 = vadd.f32 %v1705, %v1717
        %v1726 = vadd.f32 %v1708, %v1718
        %v1727 = vadd.f32 %v1710, %v1719
        %1728 = vst [vmem:[%s476] sm:$0xff] %v1720
        %1729 = vst [vmem:[%s476 + $0x8] sm:$0xff] %v1721
        %1730 = vst [vmem:[%s476 + $0x10] sm:$0xff] %v1722
        %1731 = vst [vmem:[%s476 + $0x18] sm:$0xff] %v1723
        %1732 = vst [vmem:[%s476 + $0x20] sm:$0xff] %v1724
        %1733 = vst [vmem:[%s476 + $0x28] sm:$0xff] %v1725
        %1734 = vst [vmem:[%s476 + $0x30] sm:$0xff] %v1726
        %1735 = vst [vmem:[%s476 + $0x38] sm:$0xff] %v1727
        %s1736 = sand.u32 %s322, 1
        %s1737 = scalar_lea.sflag [#allocation6], %s1736
        %s1738 = sand.u32 %s322, 1
        %s1739 = smul.addr %s1738, 64
        %s1740 = scalar_lea.vmem [#allocation5], %s1739
        // Predicated region
        $region73: #{tpu_custom_call.1} parent=67 // pred_check
          %p1741 = pneg %p332
        $region74: #{tpu_custom_call.1} parent=67 // pred_check_branch
          %1743 = sbr.rel (%p1741) target = $region76
        $region75: #{tpu_custom_call.1} parent=67 // pred_region
          %s1744 = smul.u32 8, %s31
          %1746 = vsyncadd %s1737, 0
          %s1747 = smul.addr %s30, 8
          %s1748 = sadd.s32 %s1744, %s1747
          %s1749 = smul.addr %s1748, 8
          %s1750 = scalar_lea.hbm %s12, %s1749
          %s1751 = sshll.u32 %s1740, 4
          %s1752 = int_to_ptr.vmem [resolvable:$true] %s1751
          %s1753 = sshll.u32 %s1750, 4
          %s1754 = int_to_ptr.hbm [resolvable:$true] %s1753
          %1759 = dma.vmem_to_hbm [thread:$0]  %s1752, 1024, %s1754, %s1737, 128, 128, 8
        $region76: #{tpu_custom_call.1} parent=67 // pred_fallthru
          _
      $region68: #{tpu_custom_call.1} parent=5 // pred_fallthru
        _
      %p1760 = scmp.le.s32.totalorder 2, %s21
      // Predicated region
      $region77: #{tpu_custom_call.1} parent=5 // pred_check
        %p1761 = pneg %p1760
      $region78: #{tpu_custom_call.1} parent=5 // pred_check_branch
        %1763 = sbr.rel (%p1761) target = $region80
      $region79: #{tpu_custom_call.1} parent=5 // pred_region
        %s1764 = ssub.s32 %s21, 2
        // Predicated region
        $region81: #{tpu_custom_call.1} parent=79 // pred_check
          %p1765 = pneg %p338
        $region82: #{tpu_custom_call.1} parent=79 // pred_check_branch
          %1767 = sbr.rel (%p1765) target = $region84
        $region83: #{tpu_custom_call.1} parent=79 // pred_region
          %s1768 = sand.u32 %s323, 1
          %s1769 = scalar_lea.sflag [#allocation6], %s1768
          %s1770 = sand.u32 %s323, 1
          %s1771 = smul.addr %s1770, 64
          %s1772 = scalar_lea.vmem [#allocation5], %s1771
          %1774 = dma.done %s1769, 1024
        $region84: #{tpu_custom_call.1} parent=79 // pred_fallthru
          _
      $region80: #{tpu_custom_call.1} parent=5 // pred_fallthru
        _
    $region6: #{tpu_custom_call.1} parent=1 // loop_footer
      %s25 = sadd.s32 1, %s21
    $region7: #{tpu_custom_call.1} parent=1 // loop_footer_branch
      %20 = sbr.rel target = $region3
    $region8: #{tpu_custom_call.1} parent=1 // loop_exit
      _
    %1775 = vsyncpa [#allocation6], 1
    %s1776 = scalar_lea.sflag [#allocation6], 1
    %1777 = vsyncpa %s1776, 1

</llo_original>
